<compile_context>
chip_gen: v6e
topology: v6e:2x2x1
jax: 0.10.0
libtpu: 0.0.40
codegen_flags: <defaults>
</compile_context>

<pallas_src>
import jax
import jax.numpy as jnp
import numpy as np
from jax.experimental import pallas as pl
from jax.experimental.pallas import tpu as pltpu


# ----------------------------------------------------------------------------
# Kernel: full flow forward for one batch tile, transposed (feature, batch)
# layout. Per layer l (weights already mask-folded / transposed):
#     h   = W1T[l] @ x + b1[l]                  (2H, TB)
#     a_s = tanh(h[:H]) ; a_t = relu(h[H:])     (H, TB) each  (sublane split)
#     s   = tanh(W2sT[l] @ a_s + b2s[l])        (D, TB)   ((1-mask) folded in)
#     t   =      W2tT[l] @ a_t + b2t[l]         (D, TB)   ((1-mask) folded in)
#     x   = x * exp(s) + t
#     ld_acc += s                               (reduced once after the loop)
# ----------------------------------------------------------------------------
def flow_kernel(z_ref, w1_ref, b1_ref, w2s_ref, b2s_ref, w2t_ref, b2t_ref,
                x_ref, ld_ref):
    x = z_ref[...].astype(jnp.float32)            # (D, TB)
    L, H2, _ = w1_ref.shape
    H = H2 // 2

    ld_acc = jnp.zeros_like(x)                    # (D, TB) deferred log-det acc

    # L is a small static constant; unrolled layer loop, x stays on-chip.
    for l in range(L):
        h = jnp.dot(w1_ref[l], x, preferred_element_type=jnp.float32) + b1_ref[l]
        a_s = jnp.tanh(h[:H, :])                  # scale-net hidden
        a_t = jnp.maximum(h[H:, :], 0.0)          # translation-net hidden
        s = jnp.tanh(jnp.dot(w2s_ref[l], a_s,
                             preferred_element_type=jnp.float32) + b2s_ref[l])
        t = jnp.dot(w2t_ref[l], a_t,
                    preferred_element_type=jnp.float32) + b2t_ref[l]
        x = x * jnp.exp(s) + t
        ld_acc = ld_acc + s

    x_ref[...] = x.astype(x_ref.dtype)
    ld_ref[...] = jnp.sum(ld_acc, axis=0, keepdims=True)   # (1, TB) lane-dense


def _choose_tile(B):
    # Small batches: a single whole-batch block (an exact-shape block is legal
    # even when B is not lane-aligned) -> no padding, no per-step overhead.
    if B < 256:
        return B
    # Lane-aligned tile giving >=2 grid steps (so "parallel" can shard across
    # v7x's two TensorCores) while staying large enough to amortize the
    # ~0.35us per-grid-step pipeline overhead. Cap 4096: a (2H, 4096) f32
    # hidden is ~1 MiB, far under every generation's VMEM.
    tb = 128
    while tb < 4096 and tb * 4 <= B:
        tb *= 2
    return tb


def flow_forward_fused(z, w1, b1, w2s, b2s, w2t, b2t):
    """One pallas_call for the whole flow. Returns (x (B,D), sum_log_det_J (B,))."""
    B, D = z.shape
    L, H2, _ = w1.shape
    TB = _choose_tile(B)
    n_blocks = pl.cdiv(B, TB)
    Bp = n_blocks * TB

    zT = z.T                                            # (D, B): batch on lanes
    if Bp != B:
        zT = jnp.pad(zT, ((0, 0), (0, Bp - B)))         # zero-pad tail tile

    const3 = lambda i: (0, 0, 0)   # weights: same block every step -> resident
    xT, ld = pl.pallas_call(
        flow_kernel,
        out_shape=(jax.ShapeDtypeStruct((D, Bp), jnp.float32),
                   jax.ShapeDtypeStruct((1, Bp), jnp.float32)),
        grid=(n_blocks,),
        in_specs=[
            pl.BlockSpec((D, TB), lambda i: (0, i)),    # z^T (batch tiled on lanes)
            pl.BlockSpec((L, H2, D), const3),           # W1^T (mask folded, s|t stacked)
            pl.BlockSpec((L, H2, 1), const3),           # b1^T
            pl.BlockSpec((L, D, H2 // 2), const3),      # W2s^T ((1-mask) folded)
            pl.BlockSpec((L, D, 1), const3),            # b2s^T ((1-mask) folded)
            pl.BlockSpec((L, D, H2 // 2), const3),      # W2t^T ((1-mask) folded)
            pl.BlockSpec((L, D, 1), const3),            # b2t^T ((1-mask) folded)
        ],
        out_specs=(pl.BlockSpec((D, TB), lambda i: (0, i)),
                   pl.BlockSpec((1, TB), lambda i: (0, i))),
        compiler_params=pltpu.CompilerParams(
            dimension_semantics=("parallel",)),         # shards batch on v7x's 2 TCs
    )(zT, w1, b1, w2s, b2s, w2t, b2t)

    x = xT.T[:B]
    return x, ld[0, :B]


# ----------------------------------------------------------------------------
# Flow: mirrors the PyTorch module's forward(). Weights are fused / folded /
# transposed once at construction time (pure init-time transform).
# ----------------------------------------------------------------------------
class Flow:
    def __init__(self, layers):
        # layers: list of (mask(1,D), (w1s,b1s,w2s,b2s,w1t,b1t,w2t,b2t))
        # TODO(synk): base-distribution sample()/log_prob(), inverse() and
        # loss() are not part of forward(); not implemented here.
        w1_, b1_, w2s_, b2s_, w2t_, b2t_ = [], [], [], [], [], []
        for mask, (w1s, b1s, w2s, b2s, w1t, b1t, w2t, b2t) in layers:
            D, H = w1s.shape
            m = mask.reshape(D, 1)                # (D, 1)
            inv = (1.0 - mask).reshape(D, 1)      # (D, 1)
            # first layers: fold mask in, transpose, stack scale over translation
            w1T = jnp.concatenate([(m * w1s).T, (m * w1t).T], axis=0)  # (2H, D)
            b1T = jnp.concatenate([b1s.T, b1t.T], axis=0)              # (2H, 1)
            # second layers: fold (1-mask) into the output rows (exact: mask is
            # 0/1, tanh(0)=0), transpose for the batch-on-lanes layout.
            w2sT = inv * w2s.T                    # (D, H)
            b2sT = inv * b2s.T                    # (D, 1)
            w2tT = inv * w2t.T                    # (D, H)
            b2tT = inv * b2t.T                    # (D, 1)
            w1_.append(w1T); b1_.append(b1T)
            w2s_.append(w2sT); b2s_.append(b2sT)
            w2t_.append(w2tT); b2t_.append(b2tT)
        self.w1 = jnp.stack(w1_)     # (L, 2H, D)
        self.b1 = jnp.stack(b1_)     # (L, 2H, 1)
        self.w2s = jnp.stack(w2s_)   # (L, D, H)
        self.b2s = jnp.stack(b2s_)   # (L, D, 1)
        self.w2t = jnp.stack(w2t_)   # (L, D, H)
        self.b2t = jnp.stack(b2t_)   # (L, D, 1)

    def forward(self, z):
        return flow_forward_fused(z, self.w1, self.b1, self.w2s, self.b2s,
                                  self.w2t, self.b2t)


def init_coupling_params(key, D, H):
    ks = jax.random.split(key, 4)
    scale = 0.1
    w1s = scale * jax.random.normal(ks[0], (D, H), jnp.float32)
    b1s = jnp.zeros((1, H), jnp.float32)
    w2s = scale * jax.random.normal(ks[1], (H, D), jnp.float32)
    b2s = jnp.zeros((1, D), jnp.float32)
    w1t = scale * jax.random.normal(ks[2], (D, H), jnp.float32)
    b1t = jnp.zeros((1, H), jnp.float32)
    w2t = scale * jax.random.normal(ks[3], (H, D), jnp.float32)
    b2t = jnp.zeros((1, D), jnp.float32)
    return (w1s, b1s, w2s, b2s, w1t, b1t, w2t, b2t)


def reference_forward(z, layers):
    """Plain-JAX reference matching the original per-layer PyTorch semantics."""
    sum_ld = jnp.zeros((z.shape[0],), jnp.float32)
    x = z
    for mask, (w1s, b1s, w2s, b2s, w1t, b1t, w2t, b2t) in layers:
        zm = x * mask
        s = jnp.tanh(jnp.tanh(zm @ w1s + b1s) @ w2s + b2s)
        t = jnp.maximum(zm @ w1t + b1t, 0.0) @ w2t + b2t
        x = mask * x + (1.0 - mask) * (x * jnp.exp(s) + t)
        sum_ld = sum_ld + jnp.sum((1.0 - mask) * s, axis=-1)
    return x, sum_ld


if __name__ == "__main__":
    B, D, H = 8, 16, 32
    n_layers = 4

    key = jax.random.PRNGKey(0)
    key, zkey = jax.random.split(key)
    z = jax.random.normal(zkey, (B, D), jnp.float32)

    # alternating binary (checkerboard) masks, shape (1, D)
    base_mask = (jnp.arange(D) % 2).astype(jnp.float32)[None, :]
    layers = []
    layer_keys = jax.random.split(key, n_layers)
    for i in range(n_layers):
        mask = base_mask if i % 2 == 0 else 1.0 - base_mask
        layers.append((mask, init_coupling_params(layer_keys[i], D, H)))

    flow = Flow(layers)
    x, sum_log_det_J = flow.forward(z)
    jax.block_until_ready((x, sum_log_det_J))

    assert x.shape == (B, D)
    assert sum_log_det_J.shape == (B,)

    # correctness vs. unfused plain-JAX reference
    x_ref, ld_ref = reference_forward(z, layers)
    np.testing.assert_allclose(np.asarray(x), np.asarray(x_ref),
                               rtol=1e-3, atol=1e-3)
    np.testing.assert_allclose(np.asarray(sum_log_det_J), np.asarray(ld_ref),
                               rtol=1e-3, atol=1e-3)
    print("KERNEL_OK")
</pallas_src>

<mosaic_0001>
module attributes {stable_mosaic.version = 11 : i64} {
  func.func @flow_kernel(%arg0: i32, %arg1: memref<16x8xf32, #tpu.memory_space<vmem>>, %arg2: memref<4x64x16xf32, #tpu.memory_space<vmem>>, %arg3: memref<4x64x1xf32, #tpu.memory_space<vmem>>, %arg4: memref<4x16x32xf32, #tpu.memory_space<vmem>>, %arg5: memref<4x16x1xf32, #tpu.memory_space<vmem>>, %arg6: memref<4x16x32xf32, #tpu.memory_space<vmem>>, %arg7: memref<4x16x1xf32, #tpu.memory_space<vmem>>, %arg8: memref<16x8xf32, #tpu.memory_space<vmem>>, %arg9: memref<1x8xf32, #tpu.memory_space<vmem>>) attributes {dimension_semantics = [#tpu.dimension_semantics<parallel>], iteration_bounds = array<i64: 1>, scalar_prefetch = 0 : i64, scratch_operands = 0 : i64, tpu.core_type = #tpu.core_type<tc>, window_params = [{transform_indices = @transform_0, window_bounds = array<i64: 16, 8>}, {pipeline_mode = #tpu.pipeline_mode<synchronous>, transform_indices = @transform_1, window_bounds = array<i64: 4, 64, 16>}, {pipeline_mode = #tpu.pipeline_mode<synchronous>, transform_indices = @transform_2, window_bounds = array<i64: 4, 64, 1>}, {pipeline_mode = #tpu.pipeline_mode<synchronous>, transform_indices = @transform_3, window_bounds = array<i64: 4, 16, 32>}, {pipeline_mode = #tpu.pipeline_mode<synchronous>, transform_indices = @transform_4, window_bounds = array<i64: 4, 16, 1>}, {pipeline_mode = #tpu.pipeline_mode<synchronous>, transform_indices = @transform_5, window_bounds = array<i64: 4, 16, 32>}, {pipeline_mode = #tpu.pipeline_mode<synchronous>, transform_indices = @transform_6, window_bounds = array<i64: 4, 16, 1>}, {transform_indices = @transform_7, window_bounds = array<i64: 16, 8>}, {transform_indices = @transform_8, window_bounds = array<i64: 1, 8>}]} {
    %c0 = arith.constant 0 : index
    %c0_0 = arith.constant 0 : index
    %0 = vector.load %arg1[%c0, %c0_0] : memref<16x8xf32, #tpu.memory_space<vmem>>, vector<16x8xf32>
    %cst = arith.constant 0.000000e+00 : f32
    %1 = vector.broadcast %cst : f32 to vector<16x8xf32>
    %c0_1 = arith.constant 0 : index
    %c0_2 = arith.constant 0 : index
    %c0_3 = arith.constant 0 : index
    %2 = vector.load %arg2[%c0_1, %c0_2, %c0_3] : memref<4x64x16xf32, #tpu.memory_space<vmem>>, vector<1x64x16xf32>
    %3 = vector.shape_cast %2 : vector<1x64x16xf32> to vector<64x16xf32>
    %cst_4 = arith.constant dense<0.000000e+00> : vector<64x8xf32>
    %4 = tpu.matmul %3, %0, %cst_4 {dimension_numbers = #tpu.dot_dimension_numbers<[1], [0], [0], [1], [0, 0, 1, 1], [], []>} : vector<64x16xf32>, vector<16x8xf32>, vector<64x8xf32> -> vector<64x8xf32>
    %c0_5 = arith.constant 0 : index
    %c0_6 = arith.constant 0 : index
    %c0_7 = arith.constant 0 : index
    %5 = vector.load %arg3[%c0_5, %c0_6, %c0_7] : memref<4x64x1xf32, #tpu.memory_space<vmem>>, vector<1x64x1xf32>
    %6 = vector.shape_cast %5 : vector<1x64x1xf32> to vector<64x1xf32>
    %7 = vector.broadcast %6 : vector<64x1xf32> to vector<64x8xf32>
    %8 = arith.addf %4, %7 : vector<64x8xf32>
    %9 = vector.extract_strided_slice %8 {offsets = [0, 0], sizes = [32, 8], strides = [1, 1]} : vector<64x8xf32> to vector<32x8xf32>
    %10 = math.tanh %9 : vector<32x8xf32>
    %11 = vector.extract_strided_slice %8 {offsets = [32, 0], sizes = [32, 8], strides = [1, 1]} : vector<64x8xf32> to vector<32x8xf32>
    %cst_8 = arith.constant 0.000000e+00 : f32
    %12 = vector.broadcast %cst_8 : f32 to vector<32x8xf32>
    %13 = arith.maximumf %11, %12 : vector<32x8xf32>
    %c0_9 = arith.constant 0 : index
    %c0_10 = arith.constant 0 : index
    %c0_11 = arith.constant 0 : index
    %14 = vector.load %arg4[%c0_9, %c0_10, %c0_11] : memref<4x16x32xf32, #tpu.memory_space<vmem>>, vector<1x16x32xf32>
    %15 = vector.shape_cast %14 : vector<1x16x32xf32> to vector<16x32xf32>
    %cst_12 = arith.constant dense<0.000000e+00> : vector<16x8xf32>
    %16 = tpu.matmul %15, %10, %cst_12 {dimension_numbers = #tpu.dot_dimension_numbers<[1], [0], [0], [1], [0, 0, 1, 1], [], []>} : vector<16x32xf32>, vector<32x8xf32>, vector<16x8xf32> -> vector<16x8xf32>
    %c0_13 = arith.constant 0 : index
    %c0_14 = arith.constant 0 : index
    %c0_15 = arith.constant 0 : index
    %17 = vector.load %arg5[%c0_13, %c0_14, %c0_15] : memref<4x16x1xf32, #tpu.memory_space<vmem>>, vector<1x16x1xf32>
    %18 = vector.shape_cast %17 : vector<1x16x1xf32> to vector<16x1xf32>
    %19 = vector.broadcast %18 : vector<16x1xf32> to vector<16x8xf32>
    %20 = arith.addf %16, %19 : vector<16x8xf32>
    %21 = math.tanh %20 : vector<16x8xf32>
    %c0_16 = arith.constant 0 : index
    %c0_17 = arith.constant 0 : index
    %c0_18 = arith.constant 0 : index
    %22 = vector.load %arg6[%c0_16, %c0_17, %c0_18] : memref<4x16x32xf32, #tpu.memory_space<vmem>>, vector<1x16x32xf32>
    %23 = vector.shape_cast %22 : vector<1x16x32xf32> to vector<16x32xf32>
    %cst_19 = arith.constant dense<0.000000e+00> : vector<16x8xf32>
    %24 = tpu.matmul %23, %13, %cst_19 {dimension_numbers = #tpu.dot_dimension_numbers<[1], [0], [0], [1], [0, 0, 1, 1], [], []>} : vector<16x32xf32>, vector<32x8xf32>, vector<16x8xf32> -> vector<16x8xf32>
    %c0_20 = arith.constant 0 : index
    %c0_21 = arith.constant 0 : index
    %c0_22 = arith.constant 0 : index
    %25 = vector.load %arg7[%c0_20, %c0_21, %c0_22] : memref<4x16x1xf32, #tpu.memory_space<vmem>>, vector<1x16x1xf32>
    %26 = vector.shape_cast %25 : vector<1x16x1xf32> to vector<16x1xf32>
    %27 = vector.broadcast %26 : vector<16x1xf32> to vector<16x8xf32>
    %28 = arith.addf %24, %27 : vector<16x8xf32>
    %29 = math.exp %21 : vector<16x8xf32>
    %30 = arith.mulf %0, %29 : vector<16x8xf32>
    %31 = arith.addf %30, %28 : vector<16x8xf32>
    %32 = arith.addf %1, %21 : vector<16x8xf32>
    %c1 = arith.constant 1 : index
    %c0_23 = arith.constant 0 : index
    %c0_24 = arith.constant 0 : index
    %33 = vector.load %arg2[%c1, %c0_23, %c0_24] : memref<4x64x16xf32, #tpu.memory_space<vmem>>, vector<1x64x16xf32>
    %34 = vector.shape_cast %33 : vector<1x64x16xf32> to vector<64x16xf32>
    %cst_25 = arith.constant dense<0.000000e+00> : vector<64x8xf32>
    %35 = tpu.matmul %34, %31, %cst_25 {dimension_numbers = #tpu.dot_dimension_numbers<[1], [0], [0], [1], [0, 0, 1, 1], [], []>} : vector<64x16xf32>, vector<16x8xf32>, vector<64x8xf32> -> vector<64x8xf32>
    %c1_26 = arith.constant 1 : index
    %c0_27 = arith.constant 0 : index
    %c0_28 = arith.constant 0 : index
    %36 = vector.load %arg3[%c1_26, %c0_27, %c0_28] : memref<4x64x1xf32, #tpu.memory_space<vmem>>, vector<1x64x1xf32>
    %37 = vector.shape_cast %36 : vector<1x64x1xf32> to vector<64x1xf32>
    %38 = vector.broadcast %37 : vector<64x1xf32> to vector<64x8xf32>
    %39 = arith.addf %35, %38 : vector<64x8xf32>
    %40 = vector.extract_strided_slice %39 {offsets = [0, 0], sizes = [32, 8], strides = [1, 1]} : vector<64x8xf32> to vector<32x8xf32>
    %41 = math.tanh %40 : vector<32x8xf32>
    %42 = vector.extract_strided_slice %39 {offsets = [32, 0], sizes = [32, 8], strides = [1, 1]} : vector<64x8xf32> to vector<32x8xf32>
    %cst_29 = arith.constant 0.000000e+00 : f32
    %43 = vector.broadcast %cst_29 : f32 to vector<32x8xf32>
    %44 = arith.maximumf %42, %43 : vector<32x8xf32>
    %c1_30 = arith.constant 1 : index
    %c0_31 = arith.constant 0 : index
    %c0_32 = arith.constant 0 : index
    %45 = vector.load %arg4[%c1_30, %c0_31, %c0_32] : memref<4x16x32xf32, #tpu.memory_space<vmem>>, vector<1x16x32xf32>
    %46 = vector.shape_cast %45 : vector<1x16x32xf32> to vector<16x32xf32>
    %cst_33 = arith.constant dense<0.000000e+00> : vector<16x8xf32>
    %47 = tpu.matmul %46, %41, %cst_33 {dimension_numbers = #tpu.dot_dimension_numbers<[1], [0], [0], [1], [0, 0, 1, 1], [], []>} : vector<16x32xf32>, vector<32x8xf32>, vector<16x8xf32> -> vector<16x8xf32>
    %c1_34 = arith.constant 1 : index
    %c0_35 = arith.constant 0 : index
    %c0_36 = arith.constant 0 : index
    %48 = vector.load %arg5[%c1_34, %c0_35, %c0_36] : memref<4x16x1xf32, #tpu.memory_space<vmem>>, vector<1x16x1xf32>
    %49 = vector.shape_cast %48 : vector<1x16x1xf32> to vector<16x1xf32>
    %50 = vector.broadcast %49 : vector<16x1xf32> to vector<16x8xf32>
    %51 = arith.addf %47, %50 : vector<16x8xf32>
    %52 = math.tanh %51 : vector<16x8xf32>
    %c1_37 = arith.constant 1 : index
    %c0_38 = arith.constant 0 : index
    %c0_39 = arith.constant 0 : index
    %53 = vector.load %arg6[%c1_37, %c0_38, %c0_39] : memref<4x16x32xf32, #tpu.memory_space<vmem>>, vector<1x16x32xf32>
    %54 = vector.shape_cast %53 : vector<1x16x32xf32> to vector<16x32xf32>
    %cst_40 = arith.constant dense<0.000000e+00> : vector<16x8xf32>
    %55 = tpu.matmul %54, %44, %cst_40 {dimension_numbers = #tpu.dot_dimension_numbers<[1], [0], [0], [1], [0, 0, 1, 1], [], []>} : vector<16x32xf32>, vector<32x8xf32>, vector<16x8xf32> -> vector<16x8xf32>
    %c1_41 = arith.constant 1 : index
    %c0_42 = arith.constant 0 : index
    %c0_43 = arith.constant 0 : index
    %56 = vector.load %arg7[%c1_41, %c0_42, %c0_43] : memref<4x16x1xf32, #tpu.memory_space<vmem>>, vector<1x16x1xf32>
    %57 = vector.shape_cast %56 : vector<1x16x1xf32> to vector<16x1xf32>
    %58 = vector.broadcast %57 : vector<16x1xf32> to vector<16x8xf32>
    %59 = arith.addf %55, %58 : vector<16x8xf32>
    %60 = math.exp %52 : vector<16x8xf32>
    %61 = arith.mulf %31, %60 : vector<16x8xf32>
    %62 = arith.addf %61, %59 : vector<16x8xf32>
    %63 = arith.addf %32, %52 : vector<16x8xf32>
    %c2 = arith.constant 2 : index
    %c0_44 = arith.constant 0 : index
    %c0_45 = arith.constant 0 : index
    %64 = vector.load %arg2[%c2, %c0_44, %c0_45] : memref<4x64x16xf32, #tpu.memory_space<vmem>>, vector<1x64x16xf32>
    %65 = vector.shape_cast %64 : vector<1x64x16xf32> to vector<64x16xf32>
    %cst_46 = arith.constant dense<0.000000e+00> : vector<64x8xf32>
    %66 = tpu.matmul %65, %62, %cst_46 {dimension_numbers = #tpu.dot_dimension_numbers<[1], [0], [0], [1], [0, 0, 1, 1], [], []>} : vector<64x16xf32>, vector<16x8xf32>, vector<64x8xf32> -> vector<64x8xf32>
    %c2_47 = arith.constant 2 : index
    %c0_48 = arith.constant 0 : index
    %c0_49 = arith.constant 0 : index
    %67 = vector.load %arg3[%c2_47, %c0_48, %c0_49] : memref<4x64x1xf32, #tpu.memory_space<vmem>>, vector<1x64x1xf32>
    %68 = vector.shape_cast %67 : vector<1x64x1xf32> to vector<64x1xf32>
    %69 = vector.broadcast %68 : vector<64x1xf32> to vector<64x8xf32>
    %70 = arith.addf %66, %69 : vector<64x8xf32>
    %71 = vector.extract_strided_slice %70 {offsets = [0, 0], sizes = [32, 8], strides = [1, 1]} : vector<64x8xf32> to vector<32x8xf32>
    %72 = math.tanh %71 : vector<32x8xf32>
    %73 = vector.extract_strided_slice %70 {offsets = [32, 0], sizes = [32, 8], strides = [1, 1]} : vector<64x8xf32> to vector<32x8xf32>
    %cst_50 = arith.constant 0.000000e+00 : f32
    %74 = vector.broadcast %cst_50 : f32 to vector<32x8xf32>
    %75 = arith.maximumf %73, %74 : vector<32x8xf32>
    %c2_51 = arith.constant 2 : index
    %c0_52 = arith.constant 0 : index
    %c0_53 = arith.constant 0 : index
    %76 = vector.load %arg4[%c2_51, %c0_52, %c0_53] : memref<4x16x32xf32, #tpu.memory_space<vmem>>, vector<1x16x32xf32>
    %77 = vector.shape_cast %76 : vector<1x16x32xf32> to vector<16x32xf32>
    %cst_54 = arith.constant dense<0.000000e+00> : vector<16x8xf32>
    %78 = tpu.matmul %77, %72, %cst_54 {dimension_numbers = #tpu.dot_dimension_numbers<[1], [0], [0], [1], [0, 0, 1, 1], [], []>} : vector<16x32xf32>, vector<32x8xf32>, vector<16x8xf32> -> vector<16x8xf32>
    %c2_55 = arith.constant 2 : index
    %c0_56 = arith.constant 0 : index
    %c0_57 = arith.constant 0 : index
    %79 = vector.load %arg5[%c2_55, %c0_56, %c0_57] : memref<4x16x1xf32, #tpu.memory_space<vmem>>, vector<1x16x1xf32>
    %80 = vector.shape_cast %79 : vector<1x16x1xf32> to vector<16x1xf32>
    %81 = vector.broadcast %80 : vector<16x1xf32> to vector<16x8xf32>
    %82 = arith.addf %78, %81 : vector<16x8xf32>
    %83 = math.tanh %82 : vector<16x8xf32>
    %c2_58 = arith.constant 2 : index
    %c0_59 = arith.constant 0 : index
    %c0_60 = arith.constant 0 : index
    %84 = vector.load %arg6[%c2_58, %c0_59, %c0_60] : memref<4x16x32xf32, #tpu.memory_space<vmem>>, vector<1x16x32xf32>
    %85 = vector.shape_cast %84 : vector<1x16x32xf32> to vector<16x32xf32>
    %cst_61 = arith.constant dense<0.000000e+00> : vector<16x8xf32>
    %86 = tpu.matmul %85, %75, %cst_61 {dimension_numbers = #tpu.dot_dimension_numbers<[1], [0], [0], [1], [0, 0, 1, 1], [], []>} : vector<16x32xf32>, vector<32x8xf32>, vector<16x8xf32> -> vector<16x8xf32>
    %c2_62 = arith.constant 2 : index
    %c0_63 = arith.constant 0 : index
    %c0_64 = arith.constant 0 : index
    %87 = vector.load %arg7[%c2_62, %c0_63, %c0_64] : memref<4x16x1xf32, #tpu.memory_space<vmem>>, vector<1x16x1xf32>
    %88 = vector.shape_cast %87 : vector<1x16x1xf32> to vector<16x1xf32>
    %89 = vector.broadcast %88 : vector<16x1xf32> to vector<16x8xf32>
    %90 = arith.addf %86, %89 : vector<16x8xf32>
    %91 = math.exp %83 : vector<16x8xf32>
    %92 = arith.mulf %62, %91 : vector<16x8xf32>
    %93 = arith.addf %92, %90 : vector<16x8xf32>
    %94 = arith.addf %63, %83 : vector<16x8xf32>
    %c3 = arith.constant 3 : index
    %c0_65 = arith.constant 0 : index
    %c0_66 = arith.constant 0 : index
    %95 = vector.load %arg2[%c3, %c0_65, %c0_66] : memref<4x64x16xf32, #tpu.memory_space<vmem>>, vector<1x64x16xf32>
    %96 = vector.shape_cast %95 : vector<1x64x16xf32> to vector<64x16xf32>
    %cst_67 = arith.constant dense<0.000000e+00> : vector<64x8xf32>
    %97 = tpu.matmul %96, %93, %cst_67 {dimension_numbers = #tpu.dot_dimension_numbers<[1], [0], [0], [1], [0, 0, 1, 1], [], []>} : vector<64x16xf32>, vector<16x8xf32>, vector<64x8xf32> -> vector<64x8xf32>
    %c3_68 = arith.constant 3 : index
    %c0_69 = arith.constant 0 : index
    %c0_70 = arith.constant 0 : index
    %98 = vector.load %arg3[%c3_68, %c0_69, %c0_70] : memref<4x64x1xf32, #tpu.memory_space<vmem>>, vector<1x64x1xf32>
    %99 = vector.shape_cast %98 : vector<1x64x1xf32> to vector<64x1xf32>
    %100 = vector.broadcast %99 : vector<64x1xf32> to vector<64x8xf32>
    %101 = arith.addf %97, %100 : vector<64x8xf32>
    %102 = vector.extract_strided_slice %101 {offsets = [0, 0], sizes = [32, 8], strides = [1, 1]} : vector<64x8xf32> to vector<32x8xf32>
    %103 = math.tanh %102 : vector<32x8xf32>
    %104 = vector.extract_strided_slice %101 {offsets = [32, 0], sizes = [32, 8], strides = [1, 1]} : vector<64x8xf32> to vector<32x8xf32>
    %cst_71 = arith.constant 0.000000e+00 : f32
    %105 = vector.broadcast %cst_71 : f32 to vector<32x8xf32>
    %106 = arith.maximumf %104, %105 : vector<32x8xf32>
    %c3_72 = arith.constant 3 : index
    %c0_73 = arith.constant 0 : index
    %c0_74 = arith.constant 0 : index
    %107 = vector.load %arg4[%c3_72, %c0_73, %c0_74] : memref<4x16x32xf32, #tpu.memory_space<vmem>>, vector<1x16x32xf32>
    %108 = vector.shape_cast %107 : vector<1x16x32xf32> to vector<16x32xf32>
    %cst_75 = arith.constant dense<0.000000e+00> : vector<16x8xf32>
    %109 = tpu.matmul %108, %103, %cst_75 {dimension_numbers = #tpu.dot_dimension_numbers<[1], [0], [0], [1], [0, 0, 1, 1], [], []>} : vector<16x32xf32>, vector<32x8xf32>, vector<16x8xf32> -> vector<16x8xf32>
    %c3_76 = arith.constant 3 : index
    %c0_77 = arith.constant 0 : index
    %c0_78 = arith.constant 0 : index
    %110 = vector.load %arg5[%c3_76, %c0_77, %c0_78] : memref<4x16x1xf32, #tpu.memory_space<vmem>>, vector<1x16x1xf32>
    %111 = vector.shape_cast %110 : vector<1x16x1xf32> to vector<16x1xf32>
    %112 = vector.broadcast %111 : vector<16x1xf32> to vector<16x8xf32>
    %113 = arith.addf %109, %112 : vector<16x8xf32>
    %114 = math.tanh %113 : vector<16x8xf32>
    %c3_79 = arith.constant 3 : index
    %c0_80 = arith.constant 0 : index
    %c0_81 = arith.constant 0 : index
    %115 = vector.load %arg6[%c3_79, %c0_80, %c0_81] : memref<4x16x32xf32, #tpu.memory_space<vmem>>, vector<1x16x32xf32>
    %116 = vector.shape_cast %115 : vector<1x16x32xf32> to vector<16x32xf32>
    %cst_82 = arith.constant dense<0.000000e+00> : vector<16x8xf32>
    %117 = tpu.matmul %116, %106, %cst_82 {dimension_numbers = #tpu.dot_dimension_numbers<[1], [0], [0], [1], [0, 0, 1, 1], [], []>} : vector<16x32xf32>, vector<32x8xf32>, vector<16x8xf32> -> vector<16x8xf32>
    %c3_83 = arith.constant 3 : index
    %c0_84 = arith.constant 0 : index
    %c0_85 = arith.constant 0 : index
    %118 = vector.load %arg7[%c3_83, %c0_84, %c0_85] : memref<4x16x1xf32, #tpu.memory_space<vmem>>, vector<1x16x1xf32>
    %119 = vector.shape_cast %118 : vector<1x16x1xf32> to vector<16x1xf32>
    %120 = vector.broadcast %119 : vector<16x1xf32> to vector<16x8xf32>
    %121 = arith.addf %117, %120 : vector<16x8xf32>
    %122 = math.exp %114 : vector<16x8xf32>
    %123 = arith.mulf %93, %122 : vector<16x8xf32>
    %124 = arith.addf %123, %121 : vector<16x8xf32>
    %125 = arith.addf %94, %114 : vector<16x8xf32>
    %c0_86 = arith.constant 0 : index
    %c0_87 = arith.constant 0 : index
    %126 = vector.load %arg8[%c0_86, %c0_87] : memref<16x8xf32, #tpu.memory_space<vmem>>, vector<16x8xf32>
    tpu.vector_store %arg8[%c0_86, %c0_87], %124 {strides = array<i32>} : memref<16x8xf32, #tpu.memory_space<vmem>>, vector<16x8xf32>,
    %cst_88 = arith.constant dense<0.000000e+00> : vector<8xf32>
    %127 = vector.multi_reduction <add>, %125, %cst_88 [0] : vector<16x8xf32> to vector<8xf32>
    %128 = vector.shape_cast %127 : vector<8xf32> to vector<1x8xf32>
    %c0_89 = arith.constant 0 : index
    %c0_90 = arith.constant 0 : index
    %129 = vector.load %arg9[%c0_89, %c0_90] : memref<1x8xf32, #tpu.memory_space<vmem>>, vector<1x8xf32>
    tpu.vector_store %arg9[%c0_89, %c0_90], %128 {strides = array<i32>} : memref<1x8xf32, #tpu.memory_space<vmem>>, vector<1x8xf32>,
    return
  }
  func.func @transform_0(%arg0: i32) -> (i32, i32) {
    %c0_i32 = arith.constant 0 : i32
    %c0_i32_0 = arith.constant 0 : i32
    return %c0_i32, %arg0 : i32, i32
  }
  func.func @transform_1(%arg0: i32) -> (i32, i32, i32) {
    %c0_i32 = arith.constant 0 : i32
    %c0_i32_0 = arith.constant 0 : i32
    %c0_i32_1 = arith.constant 0 : i32
    %c0_i32_2 = arith.constant 0 : i32
    return %c0_i32, %c0_i32_0, %c0_i32_1 : i32, i32, i32
  }
  func.func @transform_2(%arg0: i32) -> (i32, i32, i32) {
    %c0_i32 = arith.constant 0 : i32
    %c0_i32_0 = arith.constant 0 : i32
    %c0_i32_1 = arith.constant 0 : i32
    %c0_i32_2 = arith.constant 0 : i32
    return %c0_i32, %c0_i32_0, %c0_i32_1 : i32, i32, i32
  }
  func.func @transform_3(%arg0: i32) -> (i32, i32, i32) {
    %c0_i32 = arith.constant 0 : i32
    %c0_i32_0 = arith.constant 0 : i32
    %c0_i32_1 = arith.constant 0 : i32
    %c0_i32_2 = arith.constant 0 : i32
    return %c0_i32, %c0_i32_0, %c0_i32_1 : i32, i32, i32
  }
  func.func @transform_4(%arg0: i32) -> (i32, i32, i32) {
    %c0_i32 = arith.constant 0 : i32
    %c0_i32_0 = arith.constant 0 : i32
    %c0_i32_1 = arith.constant 0 : i32
    %c0_i32_2 = arith.constant 0 : i32
    return %c0_i32, %c0_i32_0, %c0_i32_1 : i32, i32, i32
  }
  func.func @transform_5(%arg0: i32) -> (i32, i32, i32) {
    %c0_i32 = arith.constant 0 : i32
    %c0_i32_0 = arith.constant 0 : i32
    %c0_i32_1 = arith.constant 0 : i32
    %c0_i32_2 = arith.constant 0 : i32
    return %c0_i32, %c0_i32_0, %c0_i32_1 : i32, i32, i32
  }
  func.func @transform_6(%arg0: i32) -> (i32, i32, i32) {
    %c0_i32 = arith.constant 0 : i32
    %c0_i32_0 = arith.constant 0 : i32
    %c0_i32_1 = arith.constant 0 : i32
    %c0_i32_2 = arith.constant 0 : i32
    return %c0_i32, %c0_i32_0, %c0_i32_1 : i32, i32, i32
  }
  func.func @transform_7(%arg0: i32) -> (i32, i32) {
    %c0_i32 = arith.constant 0 : i32
    %c0_i32_0 = arith.constant 0 : i32
    return %c0_i32, %arg0 : i32, i32
  }
  func.func @transform_8(%arg0: i32) -> (i32, i32) {
    %c0_i32 = arith.constant 0 : i32
    %c0_i32_0 = arith.constant 0 : i32
    return %c0_i32, %arg0 : i32, i32
  }
}

</mosaic_0001>

<llo_original>
// kernel: tpu_custom_call.1
$region0: #{tpu_custom_call.1}
  #allocation0 [shape = 'u32[]', space=smem, size = 0x4, offset = 0x4, fixed_abs, tag = 'smem constant byte address 0x4 - core index']
  #allocation1 [shape = 'u32[144,128]{1,0:T(1,128)}', space=vmem, size = 0x12000, scoped, tag = 'internal scratch']
  %s0 = inlined_call_operand.vmem [shape: f32[16,8], index: 0, kind: input, shape index: {}]
  %s1 = inlined_call_operand.vmem [shape: f32[4,64,16], index: 1, kind: input, shape index: {}]
  %s2 = inlined_call_operand.vmem [shape: f32[4,64,1], index: 2, kind: input, shape index: {}]
  %s3 = inlined_call_operand.vmem [shape: f32[4,16,32], index: 3, kind: input, shape index: {}]
  %s4 = inlined_call_operand.vmem [shape: f32[4,16,1], index: 4, kind: input, shape index: {}]
  %s5 = inlined_call_operand.vmem [shape: f32[4,16,32], index: 5, kind: input, shape index: {}]
  %s6 = inlined_call_operand.vmem [shape: f32[4,16,1], index: 6, kind: input, shape index: {}]
  %s7 = inlined_call_operand.vmem [shape: f32[16,8], index: 7, kind: output, shape index: {0}]
  %s8 = inlined_call_operand.hbm [shape: f32[1,8], index: 8, kind: output, shape index: {1}]
  %9 = xla_tuple %s7, %s8
  %s10 = sld [smem:[#allocation0]]
  $region46: #{tpu_custom_call.1} parent=0
    _
  %s12 = ssub.s32 1, %s10
  %s13 = scalar_select 0, %s12, %s10
  $region1: #{tpu_custom_call.1} parent=0
    #allocation2 [shape = 'u8[512]{0}', space=vmem, size = 0x400, scoped, tag = 'output window, operand 1, single buffered']
    #allocation3 [shape = 's32[1]{0}', space=sflag, size = 0x4, scoped, tag = 'scoped memory for tpu_custom_call.1']
    %14 = vsyncpa [#allocation3], 0
    // Predicated region
    $region2: #{tpu_custom_call.1} parent=1 // pred_check
      _
    $region3: #{tpu_custom_call.1} parent=1 // pred_check_branch
      %16 = sbr.rel (0) target = $region5
    $region4: #{tpu_custom_call.1} parent=1 // pred_region
      _
    $region5: #{tpu_custom_call.1} parent=1 // pred_fallthru
      _
    // Predicated region
    $region6: #{tpu_custom_call.1} parent=1 // pred_check
      _
    $region7: #{tpu_custom_call.1} parent=1 // pred_check_branch
      %18 = sbr.rel (0) target = $region9
    $region8: #{tpu_custom_call.1} parent=1 // pred_region
      _
    $region9: #{tpu_custom_call.1} parent=1 // pred_fallthru
      _
    // Predicated region
    $region10: #{tpu_custom_call.1} parent=1 // pred_check
      _
    $region11: #{tpu_custom_call.1} parent=1 // pred_check_branch
      %20 = sbr.rel (0) target = $region13
    $region12: #{tpu_custom_call.1} parent=1 // pred_region
      _
    $region13: #{tpu_custom_call.1} parent=1 // pred_fallthru
      _
    // Predicated region
    $region14: #{tpu_custom_call.1} parent=1 // pred_check
      _
    $region15: #{tpu_custom_call.1} parent=1 // pred_check_branch
      %22 = sbr.rel (0) target = $region17
    $region16: #{tpu_custom_call.1} parent=1 // pred_region
      _
    $region17: #{tpu_custom_call.1} parent=1 // pred_fallthru
      _
    // Predicated region
    $region18: #{tpu_custom_call.1} parent=1 // pred_check
      _
    $region19: #{tpu_custom_call.1} parent=1 // pred_check_branch
      %24 = sbr.rel (0) target = $region21
    $region20: #{tpu_custom_call.1} parent=1 // pred_region
      _
    $region21: #{tpu_custom_call.1} parent=1 // pred_fallthru
      _
    // Predicated region
    $region22: #{tpu_custom_call.1} parent=1 // pred_check
      _
    $region23: #{tpu_custom_call.1} parent=1 // pred_check_branch
      %26 = sbr.rel (0) target = $region25
    $region24: #{tpu_custom_call.1} parent=1 // pred_region
      _
    $region25: #{tpu_custom_call.1} parent=1 // pred_fallthru
      _
    // Predicated region
    $region26: #{tpu_custom_call.1} parent=1 // pred_check
      _
    $region27: #{tpu_custom_call.1} parent=1 // pred_check_branch
      %28 = sbr.rel (0) target = $region29
    $region28: #{tpu_custom_call.1} parent=1 // pred_region
      _
    $region29: #{tpu_custom_call.1} parent=1 // pred_fallthru
      _
    %v29 = vld [vmem:[%s0] sm:$0xff]
    %v30 = vld [vmem:[%s0 + $0x8] sm:$0xff]
    %v31 = vld [vmem:[%s1] sm:$0xff]
    %v32 = vld [vmem:[%s1 + $0x8] sm:$0xff]
    %v33 = vld [vmem:[%s1 + $0x10] sm:$0xff]
    %v34 = vld [vmem:[%s1 + $0x18] sm:$0xff]
    %v35 = vld [vmem:[%s1 + $0x20] sm:$0xff]
    %v36 = vld [vmem:[%s1 + $0x28] sm:$0xff]
    %v37 = vld [vmem:[%s1 + $0x30] sm:$0xff]
    %v38 = vld [vmem:[%s1 + $0x38] sm:$0xff]
    %v39 = vld [vmem:[%s2] sm:$0xff]
    %v40 = vld [vmem:[%s2 + $0x8] sm:$0xff]
    %v41 = vld [vmem:[%s2 + $0x10] sm:$0xff]
    %v42 = vld [vmem:[%s2 + $0x18] sm:$0xff]
    %v43 = vld [vmem:[%s2 + $0x20] sm:$0xff]
    %v44 = vld [vmem:[%s2 + $0x28] sm:$0xff]
    %v45 = vld [vmem:[%s2 + $0x30] sm:$0xff]
    %v46 = vld [vmem:[%s2 + $0x38] sm:$0xff]
    %48 = vset.pattern.permute.xlu0 0
    %49 = vperm.xlu0 %48, %v39
    %v50 = vpop.permute.xlu0 %49
    %53 = vset.pattern.permute.xlu0 0
    %54 = vperm.xlu0 %53, %v40
    %v55 = vpop.permute.xlu0 %54
    %58 = vset.pattern.permute.xlu0 0
    %59 = vperm.xlu0 %58, %v41
    %v60 = vpop.permute.xlu0 %59
    %63 = vset.pattern.permute.xlu0 0
    %64 = vperm.xlu0 %63, %v42
    %v65 = vpop.permute.xlu0 %64
    %68 = vset.pattern.permute.xlu0 0
    %69 = vperm.xlu0 %68, %v43
    %v70 = vpop.permute.xlu0 %69
    %73 = vset.pattern.permute.xlu0 0
    %74 = vperm.xlu0 %73, %v44
    %v75 = vpop.permute.xlu0 %74
    %78 = vset.pattern.permute.xlu0 0
    %79 = vperm.xlu0 %78, %v45
    %v80 = vpop.permute.xlu0 %79
    %83 = vset.pattern.permute.xlu0 0
    %84 = vperm.xlu0 %83, %v46
    %v85 = vpop.permute.xlu0 %84
    %vm87 = vcmask 130048
    %v89 = vsel %vm87, %v31, 0
    %v92 = vsel %vm87, %v32, 0
    %v95 = vsel %vm87, %v33, 0
    %v98 = vsel %vm87, %v34, 0
    %v101 = vsel %vm87, %v35, 0
    %v104 = vsel %vm87, %v36, 0
    %v107 = vsel %vm87, %v37, 0
    %v110 = vsel %vm87, %v38, 0
    %112 = vmatprep.subr.mxu0 0.0
    %113 = vmatpush1.msra.mxu0 0.0
    %114 = vmatprep.subr.mxu0 0.0
    %115 = vmatpush1.msra.mxu0 0.0
    %116 = vmatprep.subr.mxu0 0.0
    %117 = vmatpush1.msra.mxu0 0.0
    %118 = vmatprep.subr.mxu0 0.0
    %119 = vmatpush1.msra.mxu0 0.0
    %120 = vmatprep.subr.mxu0 0.0
    %121 = vmatpush1.msra.mxu0 0.0
    %122 = vmatprep.subr.mxu0 0.0
    %123 = vmatpush1.msra.mxu0 0.0
    %124 = vmatprep.subr.mxu0 0.0
    %125 = vmatpush1.msra.mxu0 0.0
    %126 = vmatprep.subr.mxu0 0.0
    %127 = vmatpush1.msra.mxu0 0.0
    %128 = vmatprep.subr.mxu0 0.0
    %129 = vmatpush1.msra.mxu0 0.0
    %130 = vmatprep.subr.mxu0 0.0
    %131 = vmatpush1.msra.mxu0 0.0
    %132 = vmatprep.subr.mxu0 0.0
    %133 = vmatpush1.msra.mxu0 0.0
    %134 = vmatprep.subr.mxu0 0.0
    %135 = vmatpush1.msra.mxu0 0.0
    %136 = vmatprep.subr.mxu0 0.0
    %137 = vmatpush1.msra.mxu0 0.0
    %138 = vmatprep.subr.mxu0 0.0
    %139 = vmatpush1.msra.mxu0 0.0
    %140 = vmatprep.subr.mxu0 0.0
    %141 = vmatpush1.msra.mxu0 %v30
    %142 = vmatprep.subr.mxu0 0.0
    %143 = vmatpush1.msra.mxu0 %v29
    %144 = vmatprep.subr.mxu0 0.0
    %145 = vmatpush2.msra.mxu0 0.0
    %146 = vmatprep.subr.mxu0 0.0
    %147 = vmatpush2.msra.mxu0 0.0
    %148 = vmatprep.subr.mxu0 0.0
    %149 = vmatpush2.msra.mxu0 0.0
    %150 = vmatprep.subr.mxu0 0.0
    %151 = vmatpush2.msra.mxu0 0.0
    %152 = vmatprep.subr.mxu0 0.0
    %153 = vmatpush2.msra.mxu0 0.0
    %154 = vmatprep.subr.mxu0 0.0
    %155 = vmatpush2.msra.mxu0 0.0
    %156 = vmatprep.subr.mxu0 0.0
    %157 = vmatpush2.msra.mxu0 0.0
    %158 = vmatprep.subr.mxu0 0.0
    %159 = vmatpush2.msra.mxu0 0.0
    %160 = vmatprep.subr.mxu0 0.0
    %161 = vmatpush2.msra.mxu0 0.0
    %162 = vmatprep.subr.mxu0 0.0
    %163 = vmatpush2.msra.mxu0 0.0
    %164 = vmatprep.subr.mxu0 0.0
    %165 = vmatpush2.msra.mxu0 0.0
    %166 = vmatprep.subr.mxu0 0.0
    %167 = vmatpush2.msra.mxu0 0.0
    %168 = vmatprep.subr.mxu0 0.0
    %169 = vmatpush2.msra.mxu0 0.0
    %170 = vmatprep.subr.mxu0 0.0
    %171 = vmatpush2.msra.mxu0 0.0
    %172 = vmatprep.subr.mxu0 0.0
    %173 = vmatpush2.msra.mxu0 0.0
    %174 = vmatprep.subr.mxu0 0.0
    %175 = vmatpush2.msra.mxu0 0.0
    %176 = vmatprep.mubr.f32.mxu0 0.0
    %177 = vmatmul.mubr.f32.gmra.mxu0 %v89
    %v178 = vpop.f32.mrf.mxu0
    %v179 = vadd.f32 %v50, %v178
    %v180 = vpop.f32.mrf.mxu0
    %181 = vmatprep.mubr.f32.mxu0 0.0
    %182 = vmatmul.mubr.f32.gmra.mxu0 %v92
    %v183 = vpop.f32.mrf.mxu0
    %v184 = vadd.f32 %v55, %v183
    %v185 = vpop.f32.mrf.mxu0
    %186 = vmatprep.mubr.f32.mxu0 0.0
    %187 = vmatmul.mubr.f32.gmra.mxu0 %v95
    %v188 = vpop.f32.mrf.mxu0
    %v189 = vadd.f32 %v60, %v188
    %v190 = vpop.f32.mrf.mxu0
    %191 = vmatprep.mubr.f32.mxu0 0.0
    %192 = vmatmul.mubr.f32.gmra.mxu0 %v98
    %v193 = vpop.f32.mrf.mxu0
    %v194 = vadd.f32 %v65, %v193
    %v195 = vpop.f32.mrf.mxu0
    %196 = vmatprep.mubr.f32.mxu0 0.0
    %197 = vmatmul.mubr.f32.gmra.mxu0 %v101
    %v198 = vpop.f32.mrf.mxu0
    %v199 = vadd.f32 %v70, %v198
    %v200 = vpop.f32.mrf.mxu0
    %201 = vmatprep.mubr.f32.mxu0 0.0
    %202 = vmatmul.mubr.f32.gmra.mxu0 %v104
    %v203 = vpop.f32.mrf.mxu0
    %v204 = vadd.f32 %v75, %v203
    %v205 = vpop.f32.mrf.mxu0
    %206 = vmatprep.mubr.f32.mxu0 0.0
    %207 = vmatmul.mubr.f32.gmra.mxu0 %v107
    %v208 = vpop.f32.mrf.mxu0
    %v209 = vadd.f32 %v80, %v208
    %v210 = vpop.f32.mrf.mxu0
    %211 = vmatprep.mubr.f32.mxu0 0.0
    %212 = vmatmul.mubr.f32.gmra.mxu0 %v110
    %v213 = vpop.f32.mrf.mxu0
    %v214 = vadd.f32 %v85, %v213
    %v215 = vpop.f32.mrf.mxu0
    %216 = vdwg.mxu0
    %v217 = vtanh.pop %v179
    %v218 = vtanh.pop %v184
    %v219 = vtanh.pop %v189
    %v220 = vtanh.pop %v194
    %v221 = vmax.f32 %v199, 0.0
    %v222 = vmax.f32 %v204, 0.0
    %v223 = vmax.f32 %v209, 0.0
    %v224 = vmax.f32 %v214, 0.0
    %v225 = vld [vmem:[%s3] sm:$0xff]
    %v226 = vld [vmem:[%s3 + $0x8] sm:$0xff]
    %v227 = vld [vmem:[%s4] sm:$0xff]
    %v228 = vld [vmem:[%s4 + $0x8] sm:$0xff]
    %230 = vset.pattern.permute.xlu0 0
    %231 = vperm.xlu0 %230, %v227
    %v232 = vpop.permute.xlu0 %231
    %235 = vset.pattern.permute.xlu0 0
    %236 = vperm.xlu0 %235, %v228
    %v237 = vpop.permute.xlu0 %236
    %vm239 = vcmask 261120
    %v241 = vsel %vm239, %v225, 0
    %v244 = vsel %vm239, %v226, 0
    %246 = vmatprep.subr.mxu0 0.0
    %247 = vmatpush1.msra.mxu0 0.0
    %248 = vmatprep.subr.mxu0 0.0
    %249 = vmatpush1.msra.mxu0 0.0
    %250 = vmatprep.subr.mxu0 0.0
    %251 = vmatpush1.msra.mxu0 0.0
    %252 = vmatprep.subr.mxu0 0.0
    %253 = vmatpush1.msra.mxu0 0.0
    %254 = vmatprep.subr.mxu0 0.0
    %255 = vmatpush1.msra.mxu0 0.0
    %256 = vmatprep.subr.mxu0 0.0
    %257 = vmatpush1.msra.mxu0 0.0
    %258 = vmatprep.subr.mxu0 0.0
    %259 = vmatpush1.msra.mxu0 0.0
    %260 = vmatprep.subr.mxu0 0.0
    %261 = vmatpush1.msra.mxu0 0.0
    %262 = vmatprep.subr.mxu0 0.0
    %263 = vmatpush1.msra.mxu0 0.0
    %264 = vmatprep.subr.mxu0 0.0
    %265 = vmatpush1.msra.mxu0 0.0
    %266 = vmatprep.subr.mxu0 0.0
    %267 = vmatpush1.msra.mxu0 0.0
    %268 = vmatprep.subr.mxu0 0.0
    %269 = vmatpush1.msra.mxu0 0.0
    %270 = vmatprep.subr.mxu0 0.0
    %271 = vmatpush1.msra.mxu0 %v220
    %272 = vmatprep.subr.mxu0 0.0
    %273 = vmatpush1.msra.mxu0 %v219
    %274 = vmatprep.subr.mxu0 0.0
    %275 = vmatpush1.msra.mxu0 %v218
    %276 = vmatprep.subr.mxu0 0.0
    %277 = vmatpush1.msra.mxu0 %v217
    %278 = vmatprep.subr.mxu0 0.0
    %279 = vmatpush2.msra.mxu0 0.0
    %280 = vmatprep.subr.mxu0 0.0
    %281 = vmatpush2.msra.mxu0 0.0
    %282 = vmatprep.subr.mxu0 0.0
    %283 = vmatpush2.msra.mxu0 0.0
    %284 = vmatprep.subr.mxu0 0.0
    %285 = vmatpush2.msra.mxu0 0.0
    %286 = vmatprep.subr.mxu0 0.0
    %287 = vmatpush2.msra.mxu0 0.0
    %288 = vmatprep.subr.mxu0 0.0
    %289 = vmatpush2.msra.mxu0 0.0
    %290 = vmatprep.subr.mxu0 0.0
    %291 = vmatpush2.msra.mxu0 0.0
    %292 = vmatprep.subr.mxu0 0.0
    %293 = vmatpush2.msra.mxu0 0.0
    %294 = vmatprep.subr.mxu0 0.0
    %295 = vmatpush2.msra.mxu0 0.0
    %296 = vmatprep.subr.mxu0 0.0
    %297 = vmatpush2.msra.mxu0 0.0
    %298 = vmatprep.subr.mxu0 0.0
    %299 = vmatpush2.msra.mxu0 0.0
    %300 = vmatprep.subr.mxu0 0.0
    %301 = vmatpush2.msra.mxu0 0.0
    %302 = vmatprep.subr.mxu0 0.0
    %303 = vmatpush2.msra.mxu0 0.0
    %304 = vmatprep.subr.mxu0 0.0
    %305 = vmatpush2.msra.mxu0 0.0
    %306 = vmatprep.subr.mxu0 0.0
    %307 = vmatpush2.msra.mxu0 0.0
    %308 = vmatprep.subr.mxu0 0.0
    %309 = vmatpush2.msra.mxu0 0.0
    %310 = vmatprep.mubr.f32.mxu0 0.0
    %311 = vmatmul.mubr.f32.gmra.mxu0 %v241
    %v312 = vpop.f32.mrf.mxu0
    %v313 = vadd.f32 %v232, %v312
    %v314 = vpop.f32.mrf.mxu0
    %315 = vmatprep.mubr.f32.mxu0 0.0
    %316 = vmatmul.mubr.f32.gmra.mxu0 %v244
    %v317 = vpop.f32.mrf.mxu0
    %v318 = vadd.f32 %v237, %v317
    %v319 = vpop.f32.mrf.mxu0
    %320 = vdwg.mxu0
    %v321 = vtanh.pop %v313
    %v322 = vtanh.pop %v318
    %v323 = vld [vmem:[%s5] sm:$0xff]
    %v324 = vld [vmem:[%s5 + $0x8] sm:$0xff]
    %v325 = vld [vmem:[%s6] sm:$0xff]
    %v326 = vld [vmem:[%s6 + $0x8] sm:$0xff]
    %328 = vset.pattern.permute.xlu0 0
    %329 = vperm.xlu0 %328, %v325
    %v330 = vpop.permute.xlu0 %329
    %333 = vset.pattern.permute.xlu0 0
    %334 = vperm.xlu0 %333, %v326
    %v335 = vpop.permute.xlu0 %334
    %v338 = vsel %vm239, %v323, 0
    %v341 = vsel %vm239, %v324, 0
    %343 = vmatprep.subr.mxu0 0.0
    %344 = vmatpush1.msra.mxu0 0.0
    %345 = vmatprep.subr.mxu0 0.0
    %346 = vmatpush1.msra.mxu0 0.0
    %347 = vmatprep.subr.mxu0 0.0
    %348 = vmatpush1.msra.mxu0 0.0
    %349 = vmatprep.subr.mxu0 0.0
    %350 = vmatpush1.msra.mxu0 0.0
    %351 = vmatprep.subr.mxu0 0.0
    %352 = vmatpush1.msra.mxu0 0.0
    %353 = vmatprep.subr.mxu0 0.0
    %354 = vmatpush1.msra.mxu0 0.0
    %355 = vmatprep.subr.mxu0 0.0
    %356 = vmatpush1.msra.mxu0 0.0
    %357 = vmatprep.subr.mxu0 0.0
    %358 = vmatpush1.msra.mxu0 0.0
    %359 = vmatprep.subr.mxu0 0.0
    %360 = vmatpush1.msra.mxu0 0.0
    %361 = vmatprep.subr.mxu0 0.0
    %362 = vmatpush1.msra.mxu0 0.0
    %363 = vmatprep.subr.mxu0 0.0
    %364 = vmatpush1.msra.mxu0 0.0
    %365 = vmatprep.subr.mxu0 0.0
    %366 = vmatpush1.msra.mxu0 0.0
    %367 = vmatprep.subr.mxu0 0.0
    %368 = vmatpush1.msra.mxu0 %v224
    %369 = vmatprep.subr.mxu0 0.0
    %370 = vmatpush1.msra.mxu0 %v223
    %371 = vmatprep.subr.mxu0 0.0
    %372 = vmatpush1.msra.mxu0 %v222
    %373 = vmatprep.subr.mxu0 0.0
    %374 = vmatpush1.msra.mxu0 %v221
    %375 = vmatprep.subr.mxu0 0.0
    %376 = vmatpush2.msra.mxu0 0.0
    %377 = vmatprep.subr.mxu0 0.0
    %378 = vmatpush2.msra.mxu0 0.0
    %379 = vmatprep.subr.mxu0 0.0
    %380 = vmatpush2.msra.mxu0 0.0
    %381 = vmatprep.subr.mxu0 0.0
    %382 = vmatpush2.msra.mxu0 0.0
    %383 = vmatprep.subr.mxu0 0.0
    %384 = vmatpush2.msra.mxu0 0.0
    %385 = vmatprep.subr.mxu0 0.0
    %386 = vmatpush2.msra.mxu0 0.0
    %387 = vmatprep.subr.mxu0 0.0
    %388 = vmatpush2.msra.mxu0 0.0
    %389 = vmatprep.subr.mxu0 0.0
    %390 = vmatpush2.msra.mxu0 0.0
    %391 = vmatprep.subr.mxu0 0.0
    %392 = vmatpush2.msra.mxu0 0.0
    %393 = vmatprep.subr.mxu0 0.0
    %394 = vmatpush2.msra.mxu0 0.0
    %395 = vmatprep.subr.mxu0 0.0
    %396 = vmatpush2.msra.mxu0 0.0
    %397 = vmatprep.subr.mxu0 0.0
    %398 = vmatpush2.msra.mxu0 0.0
    %399 = vmatprep.subr.mxu0 0.0
    %400 = vmatpush2.msra.mxu0 0.0
    %401 = vmatprep.subr.mxu0 0.0
    %402 = vmatpush2.msra.mxu0 0.0
    %403 = vmatprep.subr.mxu0 0.0
    %404 = vmatpush2.msra.mxu0 0.0
    %405 = vmatprep.subr.mxu0 0.0
    %406 = vmatpush2.msra.mxu0 0.0
    %407 = vmatprep.mubr.f32.mxu0 0.0
    %408 = vmatmul.mubr.f32.gmra.mxu0 %v338
    %v409 = vpop.f32.mrf.mxu0
    %v410 = vadd.f32 %v330, %v409
    %v411 = vpop.f32.mrf.mxu0
    %412 = vmatprep.mubr.f32.mxu0 0.0
    %413 = vmatmul.mubr.f32.gmra.mxu0 %v341
    %v414 = vpop.f32.mrf.mxu0
    %v415 = vadd.f32 %v335, %v414
    %v416 = vpop.f32.mrf.mxu0
    %417 = vdwg.mxu0
    %v418 = vmul.f32 %v321, 1.442695
    %v419 = vpow.pop %v418
    %v420 = vmul.f32 %v322, 1.442695
    %v421 = vpow.pop %v420
    %v422 = vmul.f32 %v29, %v419
    %v423 = vmul.f32 %v30, %v421
    %v424 = vadd.f32 %v422, %v410
    %v425 = vadd.f32 %v423, %v415
    %v426 = vadd.f32 %v321, 0.0
    %v427 = vadd.f32 %v322, 0.0
    %s428 = scalar_lea.vmem %s1, 64
    %v429 = vld [vmem:[%s428] sm:$0xff]
    %v430 = vld [vmem:[%s428 + $0x8] sm:$0xff]
    %v431 = vld [vmem:[%s428 + $0x10] sm:$0xff]
    %v432 = vld [vmem:[%s428 + $0x18] sm:$0xff]
    %v433 = vld [vmem:[%s428 + $0x20] sm:$0xff]
    %v434 = vld [vmem:[%s428 + $0x28] sm:$0xff]
    %v435 = vld [vmem:[%s428 + $0x30] sm:$0xff]
    %v436 = vld [vmem:[%s428 + $0x38] sm:$0xff]
    %s437 = scalar_lea.vmem %s2, 64
    %v438 = vld [vmem:[%s437] sm:$0xff]
    %v439 = vld [vmem:[%s437 + $0x8] sm:$0xff]
    %v440 = vld [vmem:[%s437 + $0x10] sm:$0xff]
    %v441 = vld [vmem:[%s437 + $0x18] sm:$0xff]
    %v442 = vld [vmem:[%s437 + $0x20] sm:$0xff]
    %v443 = vld [vmem:[%s437 + $0x28] sm:$0xff]
    %v444 = vld [vmem:[%s437 + $0x30] sm:$0xff]
    %v445 = vld [vmem:[%s437 + $0x38] sm:$0xff]
    %447 = vset.pattern.permute.xlu0 0
    %448 = vperm.xlu0 %447, %v438
    %v449 = vpop.permute.xlu0 %448
    %452 = vset.pattern.permute.xlu0 0
    %453 = vperm.xlu0 %452, %v439
    %v454 = vpop.permute.xlu0 %453
    %457 = vset.pattern.permute.xlu0 0
    %458 = vperm.xlu0 %457, %v440
    %v459 = vpop.permute.xlu0 %458
    %462 = vset.pattern.permute.xlu0 0
    %463 = vperm.xlu0 %462, %v441
    %v464 = vpop.permute.xlu0 %463
    %467 = vset.pattern.permute.xlu0 0
    %468 = vperm.xlu0 %467, %v442
    %v469 = vpop.permute.xlu0 %468
    %472 = vset.pattern.permute.xlu0 0
    %473 = vperm.xlu0 %472, %v443
    %v474 = vpop.permute.xlu0 %473
    %477 = vset.pattern.permute.xlu0 0
    %478 = vperm.xlu0 %477, %v444
    %v479 = vpop.permute.xlu0 %478
    %482 = vset.pattern.permute.xlu0 0
    %483 = vperm.xlu0 %482, %v445
    %v484 = vpop.permute.xlu0 %483
    %v487 = vsel %vm87, %v429, 0
    %v490 = vsel %vm87, %v430, 0
    %v493 = vsel %vm87, %v431, 0
    %v496 = vsel %vm87, %v432, 0
    %v499 = vsel %vm87, %v433, 0
    %v502 = vsel %vm87, %v434, 0
    %v505 = vsel %vm87, %v435, 0
    %v508 = vsel %vm87, %v436, 0
    %510 = vmatprep.subr.mxu0 0.0
    %511 = vmatpush1.msra.mxu0 0.0
    %512 = vmatprep.subr.mxu0 0.0
    %513 = vmatpush1.msra.mxu0 0.0
    %514 = vmatprep.subr.mxu0 0.0
    %515 = vmatpush1.msra.mxu0 0.0
    %516 = vmatprep.subr.mxu0 0.0
    %517 = vmatpush1.msra.mxu0 0.0
    %518 = vmatprep.subr.mxu0 0.0
    %519 = vmatpush1.msra.mxu0 0.0
    %520 = vmatprep.subr.mxu0 0.0
    %521 = vmatpush1.msra.mxu0 0.0
    %522 = vmatprep.subr.mxu0 0.0
    %523 = vmatpush1.msra.mxu0 0.0
    %524 = vmatprep.subr.mxu0 0.0
    %525 = vmatpush1.msra.mxu0 0.0
    %526 = vmatprep.subr.mxu0 0.0
    %527 = vmatpush1.msra.mxu0 0.0
    %528 = vmatprep.subr.mxu0 0.0
    %529 = vmatpush1.msra.mxu0 0.0
    %530 = vmatprep.subr.mxu0 0.0
    %531 = vmatpush1.msra.mxu0 0.0
    %532 = vmatprep.subr.mxu0 0.0
    %533 = vmatpush1.msra.mxu0 0.0
    %534 = vmatprep.subr.mxu0 0.0
    %535 = vmatpush1.msra.mxu0 0.0
    %536 = vmatprep.subr.mxu0 0.0
    %537 = vmatpush1.msra.mxu0 0.0
    %538 = vmatprep.subr.mxu0 0.0
    %539 = vmatpush1.msra.mxu0 %v425
    %540 = vmatprep.subr.mxu0 0.0
    %541 = vmatpush1.msra.mxu0 %v424
    %542 = vmatprep.subr.mxu0 0.0
    %543 = vmatpush2.msra.mxu0 0.0
    %544 = vmatprep.subr.mxu0 0.0
    %545 = vmatpush2.msra.mxu0 0.0
    %546 = vmatprep.subr.mxu0 0.0
    %547 = vmatpush2.msra.mxu0 0.0
    %548 = vmatprep.subr.mxu0 0.0
    %549 = vmatpush2.msra.mxu0 0.0
    %550 = vmatprep.subr.mxu0 0.0
    %551 = vmatpush2.msra.mxu0 0.0
    %552 = vmatprep.subr.mxu0 0.0
    %553 = vmatpush2.msra.mxu0 0.0
    %554 = vmatprep.subr.mxu0 0.0
    %555 = vmatpush2.msra.mxu0 0.0
    %556 = vmatprep.subr.mxu0 0.0
    %557 = vmatpush2.msra.mxu0 0.0
    %558 = vmatprep.subr.mxu0 0.0
    %559 = vmatpush2.msra.mxu0 0.0
    %560 = vmatprep.subr.mxu0 0.0
    %561 = vmatpush2.msra.mxu0 0.0
    %562 = vmatprep.subr.mxu0 0.0
    %563 = vmatpush2.msra.mxu0 0.0
    %564 = vmatprep.subr.mxu0 0.0
    %565 = vmatpush2.msra.mxu0 0.0
    %566 = vmatprep.subr.mxu0 0.0
    %567 = vmatpush2.msra.mxu0 0.0
    %568 = vmatprep.subr.mxu0 0.0
    %569 = vmatpush2.msra.mxu0 0.0
    %570 = vmatprep.subr.mxu0 0.0
    %571 = vmatpush2.msra.mxu0 0.0
    %572 = vmatprep.subr.mxu0 0.0
    %573 = vmatpush2.msra.mxu0 0.0
    %574 = vmatprep.mubr.f32.mxu0 0.0
    %575 = vmatmul.mubr.f32.gmra.mxu0 %v487
    %v576 = vpop.f32.mrf.mxu0
    %v577 = vadd.f32 %v449, %v576
    %v578 = vpop.f32.mrf.mxu0
    %579 = vmatprep.mubr.f32.mxu0 0.0
    %580 = vmatmul.mubr.f32.gmra.mxu0 %v490
    %v581 = vpop.f32.mrf.mxu0
    %v582 = vadd.f32 %v454, %v581
    %v583 = vpop.f32.mrf.mxu0
    %584 = vmatprep.mubr.f32.mxu0 0.0
    %585 = vmatmul.mubr.f32.gmra.mxu0 %v493
    %v586 = vpop.f32.mrf.mxu0
    %v587 = vadd.f32 %v459, %v586
    %v588 = vpop.f32.mrf.mxu0
    %589 = vmatprep.mubr.f32.mxu0 0.0
    %590 = vmatmul.mubr.f32.gmra.mxu0 %v496
    %v591 = vpop.f32.mrf.mxu0
    %v592 = vadd.f32 %v464, %v591
    %v593 = vpop.f32.mrf.mxu0
    %594 = vmatprep.mubr.f32.mxu0 0.0
    %595 = vmatmul.mubr.f32.gmra.mxu0 %v499
    %v596 = vpop.f32.mrf.mxu0
    %v597 = vadd.f32 %v469, %v596
    %v598 = vpop.f32.mrf.mxu0
    %599 = vmatprep.mubr.f32.mxu0 0.0
    %600 = vmatmul.mubr.f32.gmra.mxu0 %v502
    %v601 = vpop.f32.mrf.mxu0
    %v602 = vadd.f32 %v474, %v601
    %v603 = vpop.f32.mrf.mxu0
    %604 = vmatprep.mubr.f32.mxu0 0.0
    %605 = vmatmul.mubr.f32.gmra.mxu0 %v505
    %v606 = vpop.f32.mrf.mxu0
    %v607 = vadd.f32 %v479, %v606
    %v608 = vpop.f32.mrf.mxu0
    %609 = vmatprep.mubr.f32.mxu0 0.0
    %610 = vmatmul.mubr.f32.gmra.mxu0 %v508
    %v611 = vpop.f32.mrf.mxu0
    %v612 = vadd.f32 %v484, %v611
    %v613 = vpop.f32.mrf.mxu0
    %614 = vdwg.mxu0
    %v615 = vtanh.pop %v577
    %v616 = vtanh.pop %v582
    %v617 = vtanh.pop %v587
    %v618 = vtanh.pop %v592
    %v619 = vmax.f32 %v597, 0.0
    %v620 = vmax.f32 %v602, 0.0
    %v621 = vmax.f32 %v607, 0.0
    %v622 = vmax.f32 %v612, 0.0
    %s623 = scalar_lea.vmem %s3, 16
    %v624 = vld [vmem:[%s623] sm:$0xff]
    %v625 = vld [vmem:[%s623 + $0x8] sm:$0xff]
    %s626 = scalar_lea.vmem %s4, 16
    %v627 = vld [vmem:[%s626] sm:$0xff]
    %v628 = vld [vmem:[%s626 + $0x8] sm:$0xff]
    %630 = vset.pattern.permute.xlu0 0
    %631 = vperm.xlu0 %630, %v627
    %v632 = vpop.permute.xlu0 %631
    %635 = vset.pattern.permute.xlu0 0
    %636 = vperm.xlu0 %635, %v628
    %v637 = vpop.permute.xlu0 %636
    %v640 = vsel %vm239, %v624, 0
    %v643 = vsel %vm239, %v625, 0
    %645 = vmatprep.subr.mxu0 0.0
    %646 = vmatpush1.msra.mxu0 0.0
    %647 = vmatprep.subr.mxu0 0.0
    %648 = vmatpush1.msra.mxu0 0.0
    %649 = vmatprep.subr.mxu0 0.0
    %650 = vmatpush1.msra.mxu0 0.0
    %651 = vmatprep.subr.mxu0 0.0
    %652 = vmatpush1.msra.mxu0 0.0
    %653 = vmatprep.subr.mxu0 0.0
    %654 = vmatpush1.msra.mxu0 0.0
    %655 = vmatprep.subr.mxu0 0.0
    %656 = vmatpush1.msra.mxu0 0.0
    %657 = vmatprep.subr.mxu0 0.0
    %658 = vmatpush1.msra.mxu0 0.0
    %659 = vmatprep.subr.mxu0 0.0
    %660 = vmatpush1.msra.mxu0 0.0
    %661 = vmatprep.subr.mxu0 0.0
    %662 = vmatpush1.msra.mxu0 0.0
    %663 = vmatprep.subr.mxu0 0.0
    %664 = vmatpush1.msra.mxu0 0.0
    %665 = vmatprep.subr.mxu0 0.0
    %666 = vmatpush1.msra.mxu0 0.0
    %667 = vmatprep.subr.mxu0 0.0
    %668 = vmatpush1.msra.mxu0 0.0
    %669 = vmatprep.subr.mxu0 0.0
    %670 = vmatpush1.msra.mxu0 %v618
    %671 = vmatprep.subr.mxu0 0.0
    %672 = vmatpush1.msra.mxu0 %v617
    %673 = vmatprep.subr.mxu0 0.0
    %674 = vmatpush1.msra.mxu0 %v616
    %675 = vmatprep.subr.mxu0 0.0
    %676 = vmatpush1.msra.mxu0 %v615
    %677 = vmatprep.subr.mxu0 0.0
    %678 = vmatpush2.msra.mxu0 0.0
    %679 = vmatprep.subr.mxu0 0.0
    %680 = vmatpush2.msra.mxu0 0.0
    %681 = vmatprep.subr.mxu0 0.0
    %682 = vmatpush2.msra.mxu0 0.0
    %683 = vmatprep.subr.mxu0 0.0
    %684 = vmatpush2.msra.mxu0 0.0
    %685 = vmatprep.subr.mxu0 0.0
    %686 = vmatpush2.msra.mxu0 0.0
    %687 = vmatprep.subr.mxu0 0.0
    %688 = vmatpush2.msra.mxu0 0.0
    %689 = vmatprep.subr.mxu0 0.0
    %690 = vmatpush2.msra.mxu0 0.0
    %691 = vmatprep.subr.mxu0 0.0
    %692 = vmatpush2.msra.mxu0 0.0
    %693 = vmatprep.subr.mxu0 0.0
    %694 = vmatpush2.msra.mxu0 0.0
    %695 = vmatprep.subr.mxu0 0.0
    %696 = vmatpush2.msra.mxu0 0.0
    %697 = vmatprep.subr.mxu0 0.0
    %698 = vmatpush2.msra.mxu0 0.0
    %699 = vmatprep.subr.mxu0 0.0
    %700 = vmatpush2.msra.mxu0 0.0
    %701 = vmatprep.subr.mxu0 0.0
    %702 = vmatpush2.msra.mxu0 0.0
    %703 = vmatprep.subr.mxu0 0.0
    %704 = vmatpush2.msra.mxu0 0.0
    %705 = vmatprep.subr.mxu0 0.0
    %706 = vmatpush2.msra.mxu0 0.0
    %707 = vmatprep.subr.mxu0 0.0
    %708 = vmatpush2.msra.mxu0 0.0
    %709 = vmatprep.mubr.f32.mxu0 0.0
    %710 = vmatmul.mubr.f32.gmra.mxu0 %v640
    %v711 = vpop.f32.mrf.mxu0
    %v712 = vadd.f32 %v632, %v711
    %v713 = vpop.f32.mrf.mxu0
    %714 = vmatprep.mubr.f32.mxu0 0.0
    %715 = vmatmul.mubr.f32.gmra.mxu0 %v643
    %v716 = vpop.f32.mrf.mxu0
    %v717 = vadd.f32 %v637, %v716
    %v718 = vpop.f32.mrf.mxu0
    %719 = vdwg.mxu0
    %v720 = vtanh.pop %v712
    %v721 = vtanh.pop %v717
    %s722 = scalar_lea.vmem %s5, 16
    %v723 = vld [vmem:[%s722] sm:$0xff]
    %v724 = vld [vmem:[%s722 + $0x8] sm:$0xff]
    %s725 = scalar_lea.vmem %s6, 16
    %v726 = vld [vmem:[%s725] sm:$0xff]
    %v727 = vld [vmem:[%s725 + $0x8] sm:$0xff]
    %729 = vset.pattern.permute.xlu0 0
    %730 = vperm.xlu0 %729, %v726
    %v731 = vpop.permute.xlu0 %730
    %734 = vset.pattern.permute.xlu0 0
    %735 = vperm.xlu0 %734, %v727
    %v736 = vpop.permute.xlu0 %735
    %v739 = vsel %vm239, %v723, 0
    %v742 = vsel %vm239, %v724, 0
    %744 = vmatprep.subr.mxu0 0.0
    %745 = vmatpush1.msra.mxu0 0.0
    %746 = vmatprep.subr.mxu0 0.0
    %747 = vmatpush1.msra.mxu0 0.0
    %748 = vmatprep.subr.mxu0 0.0
    %749 = vmatpush1.msra.mxu0 0.0
    %750 = vmatprep.subr.mxu0 0.0
    %751 = vmatpush1.msra.mxu0 0.0
    %752 = vmatprep.subr.mxu0 0.0
    %753 = vmatpush1.msra.mxu0 0.0
    %754 = vmatprep.subr.mxu0 0.0
    %755 = vmatpush1.msra.mxu0 0.0
    %756 = vmatprep.subr.mxu0 0.0
    %757 = vmatpush1.msra.mxu0 0.0
    %758 = vmatprep.subr.mxu0 0.0
    %759 = vmatpush1.msra.mxu0 0.0
    %760 = vmatprep.subr.mxu0 0.0
    %761 = vmatpush1.msra.mxu0 0.0
    %762 = vmatprep.subr.mxu0 0.0
    %763 = vmatpush1.msra.mxu0 0.0
    %764 = vmatprep.subr.mxu0 0.0
    %765 = vmatpush1.msra.mxu0 0.0
    %766 = vmatprep.subr.mxu0 0.0
    %767 = vmatpush1.msra.mxu0 0.0
    %768 = vmatprep.subr.mxu0 0.0
    %769 = vmatpush1.msra.mxu0 %v622
    %770 = vmatprep.subr.mxu0 0.0
    %771 = vmatpush1.msra.mxu0 %v621
    %772 = vmatprep.subr.mxu0 0.0
    %773 = vmatpush1.msra.mxu0 %v620
    %774 = vmatprep.subr.mxu0 0.0
    %775 = vmatpush1.msra.mxu0 %v619
    %776 = vmatprep.subr.mxu0 0.0
    %777 = vmatpush2.msra.mxu0 0.0
    %778 = vmatprep.subr.mxu0 0.0
    %779 = vmatpush2.msra.mxu0 0.0
    %780 = vmatprep.subr.mxu0 0.0
    %781 = vmatpush2.msra.mxu0 0.0
    %782 = vmatprep.subr.mxu0 0.0
    %783 = vmatpush2.msra.mxu0 0.0
    %784 = vmatprep.subr.mxu0 0.0
    %785 = vmatpush2.msra.mxu0 0.0
    %786 = vmatprep.subr.mxu0 0.0
    %787 = vmatpush2.msra.mxu0 0.0
    %788 = vmatprep.subr.mxu0 0.0
    %789 = vmatpush2.msra.mxu0 0.0
    %790 = vmatprep.subr.mxu0 0.0
    %791 = vmatpush2.msra.mxu0 0.0
    %792 = vmatprep.subr.mxu0 0.0
    %793 = vmatpush2.msra.mxu0 0.0
    %794 = vmatprep.subr.mxu0 0.0
    %795 = vmatpush2.msra.mxu0 0.0
    %796 = vmatprep.subr.mxu0 0.0
    %797 = vmatpush2.msra.mxu0 0.0
    %798 = vmatprep.subr.mxu0 0.0
    %799 = vmatpush2.msra.mxu0 0.0
    %800 = vmatprep.subr.mxu0 0.0
    %801 = vmatpush2.msra.mxu0 0.0
    %802 = vmatprep.subr.mxu0 0.0
    %803 = vmatpush2.msra.mxu0 0.0
    %804 = vmatprep.subr.mxu0 0.0
    %805 = vmatpush2.msra.mxu0 0.0
    %806 = vmatprep.subr.mxu0 0.0
    %807 = vmatpush2.msra.mxu0 0.0
    %808 = vmatprep.mubr.f32.mxu0 0.0
    %809 = vmatmul.mubr.f32.gmra.mxu0 %v739
    %v810 = vpop.f32.mrf.mxu0
    %v811 = vadd.f32 %v731, %v810
    %v812 = vpop.f32.mrf.mxu0
    %813 = vmatprep.mubr.f32.mxu0 0.0
    %814 = vmatmul.mubr.f32.gmra.mxu0 %v742
    %v815 = vpop.f32.mrf.mxu0
    %v816 = vadd.f32 %v736, %v815
    %v817 = vpop.f32.mrf.mxu0
    %818 = vdwg.mxu0
    %v819 = vmul.f32 %v720, 1.442695
    %v820 = vpow.pop %v819
    %v821 = vmul.f32 %v721, 1.442695
    %v822 = vpow.pop %v821
    %v823 = vmul.f32 %v424, %v820
    %v824 = vmul.f32 %v425, %v822
    %v825 = vadd.f32 %v823, %v811
    %v826 = vadd.f32 %v824, %v816
    %v827 = vadd.f32 %v426, %v720
    %v828 = vadd.f32 %v427, %v721
    %s829 = scalar_lea.vmem %s1, 128
    %v830 = vld [vmem:[%s829] sm:$0xff]
    %v831 = vld [vmem:[%s829 + $0x8] sm:$0xff]
    %v832 = vld [vmem:[%s829 + $0x10] sm:$0xff]
    %v833 = vld [vmem:[%s829 + $0x18] sm:$0xff]
    %v834 = vld [vmem:[%s829 + $0x20] sm:$0xff]
    %v835 = vld [vmem:[%s829 + $0x28] sm:$0xff]
    %v836 = vld [vmem:[%s829 + $0x30] sm:$0xff]
    %v837 = vld [vmem:[%s829 + $0x38] sm:$0xff]
    %s838 = scalar_lea.vmem %s2, 128
    %v839 = vld [vmem:[%s838] sm:$0xff]
    %v840 = vld [vmem:[%s838 + $0x8] sm:$0xff]
    %v841 = vld [vmem:[%s838 + $0x10] sm:$0xff]
    %v842 = vld [vmem:[%s838 + $0x18] sm:$0xff]
    %v843 = vld [vmem:[%s838 + $0x20] sm:$0xff]
    %v844 = vld [vmem:[%s838 + $0x28] sm:$0xff]
    %v845 = vld [vmem:[%s838 + $0x30] sm:$0xff]
    %v846 = vld [vmem:[%s838 + $0x38] sm:$0xff]
    %848 = vset.pattern.permute.xlu0 0
    %849 = vperm.xlu0 %848, %v839
    %v850 = vpop.permute.xlu0 %849
    %853 = vset.pattern.permute.xlu0 0
    %854 = vperm.xlu0 %853, %v840
    %v855 = vpop.permute.xlu0 %854
    %858 = vset.pattern.permute.xlu0 0
    %859 = vperm.xlu0 %858, %v841
    %v860 = vpop.permute.xlu0 %859
    %863 = vset.pattern.permute.xlu0 0
    %864 = vperm.xlu0 %863, %v842
    %v865 = vpop.permute.xlu0 %864
    %868 = vset.pattern.permute.xlu0 0
    %869 = vperm.xlu0 %868, %v843
    %v870 = vpop.permute.xlu0 %869
    %873 = vset.pattern.permute.xlu0 0
    %874 = vperm.xlu0 %873, %v844
    %v875 = vpop.permute.xlu0 %874
    %878 = vset.pattern.permute.xlu0 0
    %879 = vperm.xlu0 %878, %v845
    %v880 = vpop.permute.xlu0 %879
    %883 = vset.pattern.permute.xlu0 0
    %884 = vperm.xlu0 %883, %v846
    %v885 = vpop.permute.xlu0 %884
    %v888 = vsel %vm87, %v830, 0
    %v891 = vsel %vm87, %v831, 0
    %v894 = vsel %vm87, %v832, 0
    %v897 = vsel %vm87, %v833, 0
    %v900 = vsel %vm87, %v834, 0
    %v903 = vsel %vm87, %v835, 0
    %v906 = vsel %vm87, %v836, 0
    %v909 = vsel %vm87, %v837, 0
    %911 = vmatprep.subr.mxu0 0.0
    %912 = vmatpush1.msra.mxu0 0.0
    %913 = vmatprep.subr.mxu0 0.0
    %914 = vmatpush1.msra.mxu0 0.0
    %915 = vmatprep.subr.mxu0 0.0
    %916 = vmatpush1.msra.mxu0 0.0
    %917 = vmatprep.subr.mxu0 0.0
    %918 = vmatpush1.msra.mxu0 0.0
    %919 = vmatprep.subr.mxu0 0.0
    %920 = vmatpush1.msra.mxu0 0.0
    %921 = vmatprep.subr.mxu0 0.0
    %922 = vmatpush1.msra.mxu0 0.0
    %923 = vmatprep.subr.mxu0 0.0
    %924 = vmatpush1.msra.mxu0 0.0
    %925 = vmatprep.subr.mxu0 0.0
    %926 = vmatpush1.msra.mxu0 0.0
    %927 = vmatprep.subr.mxu0 0.0
    %928 = vmatpush1.msra.mxu0 0.0
    %929 = vmatprep.subr.mxu0 0.0
    %930 = vmatpush1.msra.mxu0 0.0
    %931 = vmatprep.subr.mxu0 0.0
    %932 = vmatpush1.msra.mxu0 0.0
    %933 = vmatprep.subr.mxu0 0.0
    %934 = vmatpush1.msra.mxu0 0.0
    %935 = vmatprep.subr.mxu0 0.0
    %936 = vmatpush1.msra.mxu0 0.0
    %937 = vmatprep.subr.mxu0 0.0
    %938 = vmatpush1.msra.mxu0 0.0
    %939 = vmatprep.subr.mxu0 0.0
    %940 = vmatpush1.msra.mxu0 %v826
    %941 = vmatprep.subr.mxu0 0.0
    %942 = vmatpush1.msra.mxu0 %v825
    %943 = vmatprep.subr.mxu0 0.0
    %944 = vmatpush2.msra.mxu0 0.0
    %945 = vmatprep.subr.mxu0 0.0
    %946 = vmatpush2.msra.mxu0 0.0
    %947 = vmatprep.subr.mxu0 0.0
    %948 = vmatpush2.msra.mxu0 0.0
    %949 = vmatprep.subr.mxu0 0.0
    %950 = vmatpush2.msra.mxu0 0.0
    %951 = vmatprep.subr.mxu0 0.0
    %952 = vmatpush2.msra.mxu0 0.0
    %953 = vmatprep.subr.mxu0 0.0
    %954 = vmatpush2.msra.mxu0 0.0
    %955 = vmatprep.subr.mxu0 0.0
    %956 = vmatpush2.msra.mxu0 0.0
    %957 = vmatprep.subr.mxu0 0.0
    %958 = vmatpush2.msra.mxu0 0.0
    %959 = vmatprep.subr.mxu0 0.0
    %960 = vmatpush2.msra.mxu0 0.0
    %961 = vmatprep.subr.mxu0 0.0
    %962 = vmatpush2.msra.mxu0 0.0
    %963 = vmatprep.subr.mxu0 0.0
    %964 = vmatpush2.msra.mxu0 0.0
    %965 = vmatprep.subr.mxu0 0.0
    %966 = vmatpush2.msra.mxu0 0.0
    %967 = vmatprep.subr.mxu0 0.0
    %968 = vmatpush2.msra.mxu0 0.0
    %969 = vmatprep.subr.mxu0 0.0
    %970 = vmatpush2.msra.mxu0 0.0
    %971 = vmatprep.subr.mxu0 0.0
    %972 = vmatpush2.msra.mxu0 0.0
    %973 = vmatprep.subr.mxu0 0.0
    %974 = vmatpush2.msra.mxu0 0.0
    %975 = vmatprep.mubr.f32.mxu0 0.0
    %976 = vmatmul.mubr.f32.gmra.mxu0 %v888
    %v977 = vpop.f32.mrf.mxu0
    %v978 = vadd.f32 %v850, %v977
    %v979 = vpop.f32.mrf.mxu0
    %980 = vmatprep.mubr.f32.mxu0 0.0
    %981 = vmatmul.mubr.f32.gmra.mxu0 %v891
    %v982 = vpop.f32.mrf.mxu0
    %v983 = vadd.f32 %v855, %v982
    %v984 = vpop.f32.mrf.mxu0
    %985 = vmatprep.mubr.f32.mxu0 0.0
    %986 = vmatmul.mubr.f32.gmra.mxu0 %v894
    %v987 = vpop.f32.mrf.mxu0
    %v988 = vadd.f32 %v860, %v987
    %v989 = vpop.f32.mrf.mxu0
    %990 = vmatprep.mubr.f32.mxu0 0.0
    %991 = vmatmul.mubr.f32.gmra.mxu0 %v897
    %v992 = vpop.f32.mrf.mxu0
    %v993 = vadd.f32 %v865, %v992
    %v994 = vpop.f32.mrf.mxu0
    %995 = vmatprep.mubr.f32.mxu0 0.0
    %996 = vmatmul.mubr.f32.gmra.mxu0 %v900
    %v997 = vpop.f32.mrf.mxu0
    %v998 = vadd.f32 %v870, %v997
    %v999 = vpop.f32.mrf.mxu0
    %1000 = vmatprep.mubr.f32.mxu0 0.0
    %1001 = vmatmul.mubr.f32.gmra.mxu0 %v903
    %v1002 = vpop.f32.mrf.mxu0
    %v1003 = vadd.f32 %v875, %v1002
    %v1004 = vpop.f32.mrf.mxu0
    %1005 = vmatprep.mubr.f32.mxu0 0.0
    %1006 = vmatmul.mubr.f32.gmra.mxu0 %v906
    %v1007 = vpop.f32.mrf.mxu0
    %v1008 = vadd.f32 %v880, %v1007
    %v1009 = vpop.f32.mrf.mxu0
    %1010 = vmatprep.mubr.f32.mxu0 0.0
    %1011 = vmatmul.mubr.f32.gmra.mxu0 %v909
    %v1012 = vpop.f32.mrf.mxu0
    %v1013 = vadd.f32 %v885, %v1012
    %v1014 = vpop.f32.mrf.mxu0
    %1015 = vdwg.mxu0
    %v1016 = vtanh.pop %v978
    %v1017 = vtanh.pop %v983
    %v1018 = vtanh.pop %v988
    %v1019 = vtanh.pop %v993
    %v1020 = vmax.f32 %v998, 0.0
    %v1021 = vmax.f32 %v1003, 0.0
    %v1022 = vmax.f32 %v1008, 0.0
    %v1023 = vmax.f32 %v1013, 0.0
    %s1024 = scalar_lea.vmem %s3, 32
    %v1025 = vld [vmem:[%s1024] sm:$0xff]
    %v1026 = vld [vmem:[%s1024 + $0x8] sm:$0xff]
    %s1027 = scalar_lea.vmem %s4, 32
    %v1028 = vld [vmem:[%s1027] sm:$0xff]
    %v1029 = vld [vmem:[%s1027 + $0x8] sm:$0xff]
    %1031 = vset.pattern.permute.xlu0 0
    %1032 = vperm.xlu0 %1031, %v1028
    %v1033 = vpop.permute.xlu0 %1032
    %1036 = vset.pattern.permute.xlu0 0
    %1037 = vperm.xlu0 %1036, %v1029
    %v1038 = vpop.permute.xlu0 %1037
    %v1041 = vsel %vm239, %v1025, 0
    %v1044 = vsel %vm239, %v1026, 0
    %1046 = vmatprep.subr.mxu0 0.0
    %1047 = vmatpush1.msra.mxu0 0.0
    %1048 = vmatprep.subr.mxu0 0.0
    %1049 = vmatpush1.msra.mxu0 0.0
    %1050 = vmatprep.subr.mxu0 0.0
    %1051 = vmatpush1.msra.mxu0 0.0
    %1052 = vmatprep.subr.mxu0 0.0
    %1053 = vmatpush1.msra.mxu0 0.0
    %1054 = vmatprep.subr.mxu0 0.0
    %1055 = vmatpush1.msra.mxu0 0.0
    %1056 = vmatprep.subr.mxu0 0.0
    %1057 = vmatpush1.msra.mxu0 0.0
    %1058 = vmatprep.subr.mxu0 0.0
    %1059 = vmatpush1.msra.mxu0 0.0
    %1060 = vmatprep.subr.mxu0 0.0
    %1061 = vmatpush1.msra.mxu0 0.0
    %1062 = vmatprep.subr.mxu0 0.0
    %1063 = vmatpush1.msra.mxu0 0.0
    %1064 = vmatprep.subr.mxu0 0.0
    %1065 = vmatpush1.msra.mxu0 0.0
    %1066 = vmatprep.subr.mxu0 0.0
    %1067 = vmatpush1.msra.mxu0 0.0
    %1068 = vmatprep.subr.mxu0 0.0
    %1069 = vmatpush1.msra.mxu0 0.0
    %1070 = vmatprep.subr.mxu0 0.0
    %1071 = vmatpush1.msra.mxu0 %v1019
    %1072 = vmatprep.subr.mxu0 0.0
    %1073 = vmatpush1.msra.mxu0 %v1018
    %1074 = vmatprep.subr.mxu0 0.0
    %1075 = vmatpush1.msra.mxu0 %v1017
    %1076 = vmatprep.subr.mxu0 0.0
    %1077 = vmatpush1.msra.mxu0 %v1016
    %1078 = vmatprep.subr.mxu0 0.0
    %1079 = vmatpush2.msra.mxu0 0.0
    %1080 = vmatprep.subr.mxu0 0.0
    %1081 = vmatpush2.msra.mxu0 0.0
    %1082 = vmatprep.subr.mxu0 0.0
    %1083 = vmatpush2.msra.mxu0 0.0
    %1084 = vmatprep.subr.mxu0 0.0
    %1085 = vmatpush2.msra.mxu0 0.0
    %1086 = vmatprep.subr.mxu0 0.0
    %1087 = vmatpush2.msra.mxu0 0.0
    %1088 = vmatprep.subr.mxu0 0.0
    %1089 = vmatpush2.msra.mxu0 0.0
    %1090 = vmatprep.subr.mxu0 0.0
    %1091 = vmatpush2.msra.mxu0 0.0
    %1092 = vmatprep.subr.mxu0 0.0
    %1093 = vmatpush2.msra.mxu0 0.0
    %1094 = vmatprep.subr.mxu0 0.0
    %1095 = vmatpush2.msra.mxu0 0.0
    %1096 = vmatprep.subr.mxu0 0.0
    %1097 = vmatpush2.msra.mxu0 0.0
    %1098 = vmatprep.subr.mxu0 0.0
    %1099 = vmatpush2.msra.mxu0 0.0
    %1100 = vmatprep.subr.mxu0 0.0
    %1101 = vmatpush2.msra.mxu0 0.0
    %1102 = vmatprep.subr.mxu0 0.0
    %1103 = vmatpush2.msra.mxu0 0.0
    %1104 = vmatprep.subr.mxu0 0.0
    %1105 = vmatpush2.msra.mxu0 0.0
    %1106 = vmatprep.subr.mxu0 0.0
    %1107 = vmatpush2.msra.mxu0 0.0
    %1108 = vmatprep.subr.mxu0 0.0
    %1109 = vmatpush2.msra.mxu0 0.0
    %1110 = vmatprep.mubr.f32.mxu0 0.0
    %1111 = vmatmul.mubr.f32.gmra.mxu0 %v1041
    %v1112 = vpop.f32.mrf.mxu0
    %v1113 = vadd.f32 %v1033, %v1112
    %v1114 = vpop.f32.mrf.mxu0
    %1115 = vmatprep.mubr.f32.mxu0 0.0
    %1116 = vmatmul.mubr.f32.gmra.mxu0 %v1044
    %v1117 = vpop.f32.mrf.mxu0
    %v1118 = vadd.f32 %v1038, %v1117
    %v1119 = vpop.f32.mrf.mxu0
    %1120 = vdwg.mxu0
    %v1121 = vtanh.pop %v1113
    %v1122 = vtanh.pop %v1118
    %s1123 = scalar_lea.vmem %s5, 32
    %v1124 = vld [vmem:[%s1123] sm:$0xff]
    %v1125 = vld [vmem:[%s1123 + $0x8] sm:$0xff]
    %s1126 = scalar_lea.vmem %s6, 32
    %v1127 = vld [vmem:[%s1126] sm:$0xff]
    %v1128 = vld [vmem:[%s1126 + $0x8] sm:$0xff]
    %1130 = vset.pattern.permute.xlu0 0
    %1131 = vperm.xlu0 %1130, %v1127
    %v1132 = vpop.permute.xlu0 %1131
    %1135 = vset.pattern.permute.xlu0 0
    %1136 = vperm.xlu0 %1135, %v1128
    %v1137 = vpop.permute.xlu0 %1136
    %v1140 = vsel %vm239, %v1124, 0
    %v1143 = vsel %vm239, %v1125, 0
    %1145 = vmatprep.subr.mxu0 0.0
    %1146 = vmatpush1.msra.mxu0 0.0
    %1147 = vmatprep.subr.mxu0 0.0
    %1148 = vmatpush1.msra.mxu0 0.0
    %1149 = vmatprep.subr.mxu0 0.0
    %1150 = vmatpush1.msra.mxu0 0.0
    %1151 = vmatprep.subr.mxu0 0.0
    %1152 = vmatpush1.msra.mxu0 0.0
    %1153 = vmatprep.subr.mxu0 0.0
    %1154 = vmatpush1.msra.mxu0 0.0
    %1155 = vmatprep.subr.mxu0 0.0
    %1156 = vmatpush1.msra.mxu0 0.0
    %1157 = vmatprep.subr.mxu0 0.0
    %1158 = vmatpush1.msra.mxu0 0.0
    %1159 = vmatprep.subr.mxu0 0.0
    %1160 = vmatpush1.msra.mxu0 0.0
    %1161 = vmatprep.subr.mxu0 0.0
    %1162 = vmatpush1.msra.mxu0 0.0
    %1163 = vmatprep.subr.mxu0 0.0
    %1164 = vmatpush1.msra.mxu0 0.0
    %1165 = vmatprep.subr.mxu0 0.0
    %1166 = vmatpush1.msra.mxu0 0.0
    %1167 = vmatprep.subr.mxu0 0.0
    %1168 = vmatpush1.msra.mxu0 0.0
    %1169 = vmatprep.subr.mxu0 0.0
    %1170 = vmatpush1.msra.mxu0 %v1023
    %1171 = vmatprep.subr.mxu0 0.0
    %1172 = vmatpush1.msra.mxu0 %v1022
    %1173 = vmatprep.subr.mxu0 0.0
    %1174 = vmatpush1.msra.mxu0 %v1021
    %1175 = vmatprep.subr.mxu0 0.0
    %1176 = vmatpush1.msra.mxu0 %v1020
    %1177 = vmatprep.subr.mxu0 0.0
    %1178 = vmatpush2.msra.mxu0 0.0
    %1179 = vmatprep.subr.mxu0 0.0
    %1180 = vmatpush2.msra.mxu0 0.0
    %1181 = vmatprep.subr.mxu0 0.0
    %1182 = vmatpush2.msra.mxu0 0.0
    %1183 = vmatprep.subr.mxu0 0.0
    %1184 = vmatpush2.msra.mxu0 0.0
    %1185 = vmatprep.subr.mxu0 0.0
    %1186 = vmatpush2.msra.mxu0 0.0
    %1187 = vmatprep.subr.mxu0 0.0
    %1188 = vmatpush2.msra.mxu0 0.0
    %1189 = vmatprep.subr.mxu0 0.0
    %1190 = vmatpush2.msra.mxu0 0.0
    %1191 = vmatprep.subr.mxu0 0.0
    %1192 = vmatpush2.msra.mxu0 0.0
    %1193 = vmatprep.subr.mxu0 0.0
    %1194 = vmatpush2.msra.mxu0 0.0
    %1195 = vmatprep.subr.mxu0 0.0
    %1196 = vmatpush2.msra.mxu0 0.0
    %1197 = vmatprep.subr.mxu0 0.0
    %1198 = vmatpush2.msra.mxu0 0.0
    %1199 = vmatprep.subr.mxu0 0.0
    %1200 = vmatpush2.msra.mxu0 0.0
    %1201 = vmatprep.subr.mxu0 0.0
    %1202 = vmatpush2.msra.mxu0 0.0
    %1203 = vmatprep.subr.mxu0 0.0
    %1204 = vmatpush2.msra.mxu0 0.0
    %1205 = vmatprep.subr.mxu0 0.0
    %1206 = vmatpush2.msra.mxu0 0.0
    %1207 = vmatprep.subr.mxu0 0.0
    %1208 = vmatpush2.msra.mxu0 0.0
    %1209 = vmatprep.mubr.f32.mxu0 0.0
    %1210 = vmatmul.mubr.f32.gmra.mxu0 %v1140
    %v1211 = vpop.f32.mrf.mxu0
    %v1212 = vadd.f32 %v1132, %v1211
    %v1213 = vpop.f32.mrf.mxu0
    %1214 = vmatprep.mubr.f32.mxu0 0.0
    %1215 = vmatmul.mubr.f32.gmra.mxu0 %v1143
    %v1216 = vpop.f32.mrf.mxu0
    %v1217 = vadd.f32 %v1137, %v1216
    %v1218 = vpop.f32.mrf.mxu0
    %1219 = vdwg.mxu0
    %v1220 = vmul.f32 %v1121, 1.442695
    %v1221 = vpow.pop %v1220
    %v1222 = vmul.f32 %v1122, 1.442695
    %v1223 = vpow.pop %v1222
    %v1224 = vmul.f32 %v825, %v1221
    %v1225 = vmul.f32 %v826, %v1223
    %v1226 = vadd.f32 %v1224, %v1212
    %v1227 = vadd.f32 %v1225, %v1217
    %v1228 = vadd.f32 %v827, %v1121
    %v1229 = vadd.f32 %v828, %v1122
    %s1230 = scalar_lea.vmem %s1, 192
    %v1231 = vld [vmem:[%s1230] sm:$0xff]
    %v1232 = vld [vmem:[%s1230 + $0x8] sm:$0xff]
    %v1233 = vld [vmem:[%s1230 + $0x10] sm:$0xff]
    %v1234 = vld [vmem:[%s1230 + $0x18] sm:$0xff]
    %v1235 = vld [vmem:[%s1230 + $0x20] sm:$0xff]
    %v1236 = vld [vmem:[%s1230 + $0x28] sm:$0xff]
    %v1237 = vld [vmem:[%s1230 + $0x30] sm:$0xff]
    %v1238 = vld [vmem:[%s1230 + $0x38] sm:$0xff]
    %s1239 = scalar_lea.vmem %s2, 192
    %v1240 = vld [vmem:[%s1239] sm:$0xff]
    %v1241 = vld [vmem:[%s1239 + $0x8] sm:$0xff]
    %v1242 = vld [vmem:[%s1239 + $0x10] sm:$0xff]
    %v1243 = vld [vmem:[%s1239 + $0x18] sm:$0xff]
    %v1244 = vld [vmem:[%s1239 + $0x20] sm:$0xff]
    %v1245 = vld [vmem:[%s1239 + $0x28] sm:$0xff]
    %v1246 = vld [vmem:[%s1239 + $0x30] sm:$0xff]
    %v1247 = vld [vmem:[%s1239 + $0x38] sm:$0xff]
    %1249 = vset.pattern.permute.xlu0 0
    %1250 = vperm.xlu0 %1249, %v1240
    %v1251 = vpop.permute.xlu0 %1250
    %1254 = vset.pattern.permute.xlu0 0
    %1255 = vperm.xlu0 %1254, %v1241
    %v1256 = vpop.permute.xlu0 %1255
    %1259 = vset.pattern.permute.xlu0 0
    %1260 = vperm.xlu0 %1259, %v1242
    %v1261 = vpop.permute.xlu0 %1260
    %1264 = vset.pattern.permute.xlu0 0
    %1265 = vperm.xlu0 %1264, %v1243
    %v1266 = vpop.permute.xlu0 %1265
    %1269 = vset.pattern.permute.xlu0 0
    %1270 = vperm.xlu0 %1269, %v1244
    %v1271 = vpop.permute.xlu0 %1270
    %1274 = vset.pattern.permute.xlu0 0
    %1275 = vperm.xlu0 %1274, %v1245
    %v1276 = vpop.permute.xlu0 %1275
    %1279 = vset.pattern.permute.xlu0 0
    %1280 = vperm.xlu0 %1279, %v1246
    %v1281 = vpop.permute.xlu0 %1280
    %1284 = vset.pattern.permute.xlu0 0
    %1285 = vperm.xlu0 %1284, %v1247
    %v1286 = vpop.permute.xlu0 %1285
    %v1289 = vsel %vm87, %v1231, 0
    %v1292 = vsel %vm87, %v1232, 0
    %v1295 = vsel %vm87, %v1233, 0
    %v1298 = vsel %vm87, %v1234, 0
    %v1301 = vsel %vm87, %v1235, 0
    %v1304 = vsel %vm87, %v1236, 0
    %v1307 = vsel %vm87, %v1237, 0
    %v1310 = vsel %vm87, %v1238, 0
    %1312 = vmatprep.subr.mxu0 0.0
    %1313 = vmatpush1.msra.mxu0 0.0
    %1314 = vmatprep.subr.mxu0 0.0
    %1315 = vmatpush1.msra.mxu0 0.0
    %1316 = vmatprep.subr.mxu0 0.0
    %1317 = vmatpush1.msra.mxu0 0.0
    %1318 = vmatprep.subr.mxu0 0.0
    %1319 = vmatpush1.msra.mxu0 0.0
    %1320 = vmatprep.subr.mxu0 0.0
    %1321 = vmatpush1.msra.mxu0 0.0
    %1322 = vmatprep.subr.mxu0 0.0
    %1323 = vmatpush1.msra.mxu0 0.0
    %1324 = vmatprep.subr.mxu0 0.0
    %1325 = vmatpush1.msra.mxu0 0.0
    %1326 = vmatprep.subr.mxu0 0.0
    %1327 = vmatpush1.msra.mxu0 0.0
    %1328 = vmatprep.subr.mxu0 0.0
    %1329 = vmatpush1.msra.mxu0 0.0
    %1330 = vmatprep.subr.mxu0 0.0
    %1331 = vmatpush1.msra.mxu0 0.0
    %1332 = vmatprep.subr.mxu0 0.0
    %1333 = vmatpush1.msra.mxu0 0.0
    %1334 = vmatprep.subr.mxu0 0.0
    %1335 = vmatpush1.msra.mxu0 0.0
    %1336 = vmatprep.subr.mxu0 0.0
    %1337 = vmatpush1.msra.mxu0 0.0
    %1338 = vmatprep.subr.mxu0 0.0
    %1339 = vmatpush1.msra.mxu0 0.0
    %1340 = vmatprep.subr.mxu0 0.0
    %1341 = vmatpush1.msra.mxu0 %v1227
    %1342 = vmatprep.subr.mxu0 0.0
    %1343 = vmatpush1.msra.mxu0 %v1226
    %1344 = vmatprep.subr.mxu0 0.0
    %1345 = vmatpush2.msra.mxu0 0.0
    %1346 = vmatprep.subr.mxu0 0.0
    %1347 = vmatpush2.msra.mxu0 0.0
    %1348 = vmatprep.subr.mxu0 0.0
    %1349 = vmatpush2.msra.mxu0 0.0
    %1350 = vmatprep.subr.mxu0 0.0
    %1351 = vmatpush2.msra.mxu0 0.0
    %1352 = vmatprep.subr.mxu0 0.0
    %1353 = vmatpush2.msra.mxu0 0.0
    %1354 = vmatprep.subr.mxu0 0.0
    %1355 = vmatpush2.msra.mxu0 0.0
    %1356 = vmatprep.subr.mxu0 0.0
    %1357 = vmatpush2.msra.mxu0 0.0
    %1358 = vmatprep.subr.mxu0 0.0
    %1359 = vmatpush2.msra.mxu0 0.0
    %1360 = vmatprep.subr.mxu0 0.0
    %1361 = vmatpush2.msra.mxu0 0.0
    %1362 = vmatprep.subr.mxu0 0.0
    %1363 = vmatpush2.msra.mxu0 0.0
    %1364 = vmatprep.subr.mxu0 0.0
    %1365 = vmatpush2.msra.mxu0 0.0
    %1366 = vmatprep.subr.mxu0 0.0
    %1367 = vmatpush2.msra.mxu0 0.0
    %1368 = vmatprep.subr.mxu0 0.0
    %1369 = vmatpush2.msra.mxu0 0.0
    %1370 = vmatprep.subr.mxu0 0.0
    %1371 = vmatpush2.msra.mxu0 0.0
    %1372 = vmatprep.subr.mxu0 0.0
    %1373 = vmatpush2.msra.mxu0 0.0
    %1374 = vmatprep.subr.mxu0 0.0
    %1375 = vmatpush2.msra.mxu0 0.0
    %1376 = vmatprep.mubr.f32.mxu0 0.0
    %1377 = vmatmul.mubr.f32.gmra.mxu0 %v1289
    %v1378 = vpop.f32.mrf.mxu0
    %v1379 = vadd.f32 %v1251, %v1378
    %v1380 = vpop.f32.mrf.mxu0
    %1381 = vmatprep.mubr.f32.mxu0 0.0
    %1382 = vmatmul.mubr.f32.gmra.mxu0 %v1292
    %v1383 = vpop.f32.mrf.mxu0
    %v1384 = vadd.f32 %v1256, %v1383
    %v1385 = vpop.f32.mrf.mxu0
    %1386 = vmatprep.mubr.f32.mxu0 0.0
    %1387 = vmatmul.mubr.f32.gmra.mxu0 %v1295
    %v1388 = vpop.f32.mrf.mxu0
    %v1389 = vadd.f32 %v1261, %v1388
    %v1390 = vpop.f32.mrf.mxu0
    %1391 = vmatprep.mubr.f32.mxu0 0.0
    %1392 = vmatmul.mubr.f32.gmra.mxu0 %v1298
    %v1393 = vpop.f32.mrf.mxu0
    %v1394 = vadd.f32 %v1266, %v1393
    %v1395 = vpop.f32.mrf.mxu0
    %1396 = vmatprep.mubr.f32.mxu0 0.0
    %1397 = vmatmul.mubr.f32.gmra.mxu0 %v1301
    %v1398 = vpop.f32.mrf.mxu0
    %v1399 = vadd.f32 %v1271, %v1398
    %v1400 = vpop.f32.mrf.mxu0
    %1401 = vmatprep.mubr.f32.mxu0 0.0
    %1402 = vmatmul.mubr.f32.gmra.mxu0 %v1304
    %v1403 = vpop.f32.mrf.mxu0
    %v1404 = vadd.f32 %v1276, %v1403
    %v1405 = vpop.f32.mrf.mxu0
    %1406 = vmatprep.mubr.f32.mxu0 0.0
    %1407 = vmatmul.mubr.f32.gmra.mxu0 %v1307
    %v1408 = vpop.f32.mrf.mxu0
    %v1409 = vadd.f32 %v1281, %v1408
    %v1410 = vpop.f32.mrf.mxu0
    %1411 = vmatprep.mubr.f32.mxu0 0.0
    %1412 = vmatmul.mubr.f32.gmra.mxu0 %v1310
    %v1413 = vpop.f32.mrf.mxu0
    %v1414 = vadd.f32 %v1286, %v1413
    %v1415 = vpop.f32.mrf.mxu0
    %1416 = vdwg.mxu0
    %v1417 = vtanh.pop %v1379
    %v1418 = vtanh.pop %v1384
    %v1419 = vtanh.pop %v1389
    %v1420 = vtanh.pop %v1394
    %v1421 = vmax.f32 %v1399, 0.0
    %v1422 = vmax.f32 %v1404, 0.0
    %v1423 = vmax.f32 %v1409, 0.0
    %v1424 = vmax.f32 %v1414, 0.0
    %s1425 = scalar_lea.vmem %s3, 48
    %v1426 = vld [vmem:[%s1425] sm:$0xff]
    %v1427 = vld [vmem:[%s1425 + $0x8] sm:$0xff]
    %s1428 = scalar_lea.vmem %s4, 48
    %v1429 = vld [vmem:[%s1428] sm:$0xff]
    %v1430 = vld [vmem:[%s1428 + $0x8] sm:$0xff]
    %1432 = vset.pattern.permute.xlu0 0
    %1433 = vperm.xlu0 %1432, %v1429
    %v1434 = vpop.permute.xlu0 %1433
    %1437 = vset.pattern.permute.xlu0 0
    %1438 = vperm.xlu0 %1437, %v1430
    %v1439 = vpop.permute.xlu0 %1438
    %v1442 = vsel %vm239, %v1426, 0
    %v1445 = vsel %vm239, %v1427, 0
    %1447 = vmatprep.subr.mxu0 0.0
    %1448 = vmatpush1.msra.mxu0 0.0
    %1449 = vmatprep.subr.mxu0 0.0
    %1450 = vmatpush1.msra.mxu0 0.0
    %1451 = vmatprep.subr.mxu0 0.0
    %1452 = vmatpush1.msra.mxu0 0.0
    %1453 = vmatprep.subr.mxu0 0.0
    %1454 = vmatpush1.msra.mxu0 0.0
    %1455 = vmatprep.subr.mxu0 0.0
    %1456 = vmatpush1.msra.mxu0 0.0
    %1457 = vmatprep.subr.mxu0 0.0
    %1458 = vmatpush1.msra.mxu0 0.0
    %1459 = vmatprep.subr.mxu0 0.0
    %1460 = vmatpush1.msra.mxu0 0.0
    %1461 = vmatprep.subr.mxu0 0.0
    %1462 = vmatpush1.msra.mxu0 0.0
    %1463 = vmatprep.subr.mxu0 0.0
    %1464 = vmatpush1.msra.mxu0 0.0
    %1465 = vmatprep.subr.mxu0 0.0
    %1466 = vmatpush1.msra.mxu0 0.0
    %1467 = vmatprep.subr.mxu0 0.0
    %1468 = vmatpush1.msra.mxu0 0.0
    %1469 = vmatprep.subr.mxu0 0.0
    %1470 = vmatpush1.msra.mxu0 0.0
    %1471 = vmatprep.subr.mxu0 0.0
    %1472 = vmatpush1.msra.mxu0 %v1420
    %1473 = vmatprep.subr.mxu0 0.0
    %1474 = vmatpush1.msra.mxu0 %v1419
    %1475 = vmatprep.subr.mxu0 0.0
    %1476 = vmatpush1.msra.mxu0 %v1418
    %1477 = vmatprep.subr.mxu0 0.0
    %1478 = vmatpush1.msra.mxu0 %v1417
    %1479 = vmatprep.subr.mxu0 0.0
    %1480 = vmatpush2.msra.mxu0 0.0
    %1481 = vmatprep.subr.mxu0 0.0
    %1482 = vmatpush2.msra.mxu0 0.0
    %1483 = vmatprep.subr.mxu0 0.0
    %1484 = vmatpush2.msra.mxu0 0.0
    %1485 = vmatprep.subr.mxu0 0.0
    %1486 = vmatpush2.msra.mxu0 0.0
    %1487 = vmatprep.subr.mxu0 0.0
    %1488 = vmatpush2.msra.mxu0 0.0
    %1489 = vmatprep.subr.mxu0 0.0
    %1490 = vmatpush2.msra.mxu0 0.0
    %1491 = vmatprep.subr.mxu0 0.0
    %1492 = vmatpush2.msra.mxu0 0.0
    %1493 = vmatprep.subr.mxu0 0.0
    %1494 = vmatpush2.msra.mxu0 0.0
    %1495 = vmatprep.subr.mxu0 0.0
    %1496 = vmatpush2.msra.mxu0 0.0
    %1497 = vmatprep.subr.mxu0 0.0
    %1498 = vmatpush2.msra.mxu0 0.0
    %1499 = vmatprep.subr.mxu0 0.0
    %1500 = vmatpush2.msra.mxu0 0.0
    %1501 = vmatprep.subr.mxu0 0.0
    %1502 = vmatpush2.msra.mxu0 0.0
    %1503 = vmatprep.subr.mxu0 0.0
    %1504 = vmatpush2.msra.mxu0 0.0
    %1505 = vmatprep.subr.mxu0 0.0
    %1506 = vmatpush2.msra.mxu0 0.0
    %1507 = vmatprep.subr.mxu0 0.0
    %1508 = vmatpush2.msra.mxu0 0.0
    %1509 = vmatprep.subr.mxu0 0.0
    %1510 = vmatpush2.msra.mxu0 0.0
    %1511 = vmatprep.mubr.f32.mxu0 0.0
    %1512 = vmatmul.mubr.f32.gmra.mxu0 %v1442
    %v1513 = vpop.f32.mrf.mxu0
    %v1514 = vadd.f32 %v1434, %v1513
    %v1515 = vpop.f32.mrf.mxu0
    %1516 = vmatprep.mubr.f32.mxu0 0.0
    %1517 = vmatmul.mubr.f32.gmra.mxu0 %v1445
    %v1518 = vpop.f32.mrf.mxu0
    %v1519 = vadd.f32 %v1439, %v1518
    %v1520 = vpop.f32.mrf.mxu0
    %1521 = vdwg.mxu0
    %v1522 = vtanh.pop %v1514
    %v1523 = vtanh.pop %v1519
    %s1524 = scalar_lea.vmem %s5, 48
    %v1525 = vld [vmem:[%s1524] sm:$0xff]
    %v1526 = vld [vmem:[%s1524 + $0x8] sm:$0xff]
    %s1527 = scalar_lea.vmem %s6, 48
    %v1528 = vld [vmem:[%s1527] sm:$0xff]
    %v1529 = vld [vmem:[%s1527 + $0x8] sm:$0xff]
    %1531 = vset.pattern.permute.xlu0 0
    %1532 = vperm.xlu0 %1531, %v1528
    %v1533 = vpop.permute.xlu0 %1532
    %1536 = vset.pattern.permute.xlu0 0
    %1537 = vperm.xlu0 %1536, %v1529
    %v1538 = vpop.permute.xlu0 %1537
    %v1541 = vsel %vm239, %v1525, 0
    %v1544 = vsel %vm239, %v1526, 0
    %1546 = vmatprep.subr.mxu0 0.0
    %1547 = vmatpush1.msra.mxu0 0.0
    %1548 = vmatprep.subr.mxu0 0.0
    %1549 = vmatpush1.msra.mxu0 0.0
    %1550 = vmatprep.subr.mxu0 0.0
    %1551 = vmatpush1.msra.mxu0 0.0
    %1552 = vmatprep.subr.mxu0 0.0
    %1553 = vmatpush1.msra.mxu0 0.0
    %1554 = vmatprep.subr.mxu0 0.0
    %1555 = vmatpush1.msra.mxu0 0.0
    %1556 = vmatprep.subr.mxu0 0.0
    %1557 = vmatpush1.msra.mxu0 0.0
    %1558 = vmatprep.subr.mxu0 0.0
    %1559 = vmatpush1.msra.mxu0 0.0
    %1560 = vmatprep.subr.mxu0 0.0
    %1561 = vmatpush1.msra.mxu0 0.0
    %1562 = vmatprep.subr.mxu0 0.0
    %1563 = vmatpush1.msra.mxu0 0.0
    %1564 = vmatprep.subr.mxu0 0.0
    %1565 = vmatpush1.msra.mxu0 0.0
    %1566 = vmatprep.subr.mxu0 0.0
    %1567 = vmatpush1.msra.mxu0 0.0
    %1568 = vmatprep.subr.mxu0 0.0
    %1569 = vmatpush1.msra.mxu0 0.0
    %1570 = vmatprep.subr.mxu0 0.0
    %1571 = vmatpush1.msra.mxu0 %v1424
    %1572 = vmatprep.subr.mxu0 0.0
    %1573 = vmatpush1.msra.mxu0 %v1423
    %1574 = vmatprep.subr.mxu0 0.0
    %1575 = vmatpush1.msra.mxu0 %v1422
    %1576 = vmatprep.subr.mxu0 0.0
    %1577 = vmatpush1.msra.mxu0 %v1421
    %1578 = vmatprep.subr.mxu0 0.0
    %1579 = vmatpush2.msra.mxu0 0.0
    %1580 = vmatprep.subr.mxu0 0.0
    %1581 = vmatpush2.msra.mxu0 0.0
    %1582 = vmatprep.subr.mxu0 0.0
    %1583 = vmatpush2.msra.mxu0 0.0
    %1584 = vmatprep.subr.mxu0 0.0
    %1585 = vmatpush2.msra.mxu0 0.0
    %1586 = vmatprep.subr.mxu0 0.0
    %1587 = vmatpush2.msra.mxu0 0.0
    %1588 = vmatprep.subr.mxu0 0.0
    %1589 = vmatpush2.msra.mxu0 0.0
    %1590 = vmatprep.subr.mxu0 0.0
    %1591 = vmatpush2.msra.mxu0 0.0
    %1592 = vmatprep.subr.mxu0 0.0
    %1593 = vmatpush2.msra.mxu0 0.0
    %1594 = vmatprep.subr.mxu0 0.0
    %1595 = vmatpush2.msra.mxu0 0.0
    %1596 = vmatprep.subr.mxu0 0.0
    %1597 = vmatpush2.msra.mxu0 0.0
    %1598 = vmatprep.subr.mxu0 0.0
    %1599 = vmatpush2.msra.mxu0 0.0
    %1600 = vmatprep.subr.mxu0 0.0
    %1601 = vmatpush2.msra.mxu0 0.0
    %1602 = vmatprep.subr.mxu0 0.0
    %1603 = vmatpush2.msra.mxu0 0.0
    %1604 = vmatprep.subr.mxu0 0.0
    %1605 = vmatpush2.msra.mxu0 0.0
    %1606 = vmatprep.subr.mxu0 0.0
    %1607 = vmatpush2.msra.mxu0 0.0
    %1608 = vmatprep.subr.mxu0 0.0
    %1609 = vmatpush2.msra.mxu0 0.0
    %1610 = vmatprep.mubr.f32.mxu0 0.0
    %1611 = vmatmul.mubr.f32.gmra.mxu0 %v1541
    %v1612 = vpop.f32.mrf.mxu0
    %v1613 = vadd.f32 %v1533, %v1612
    %v1614 = vpop.f32.mrf.mxu0
    %1615 = vmatprep.mubr.f32.mxu0 0.0
    %1616 = vmatmul.mubr.f32.gmra.mxu0 %v1544
    %v1617 = vpop.f32.mrf.mxu0
    %v1618 = vadd.f32 %v1538, %v1617
    %v1619 = vpop.f32.mrf.mxu0
    %1620 = vdwg.mxu0
    %v1621 = vmul.f32 %v1522, 1.442695
    %v1622 = vpow.pop %v1621
    %v1623 = vmul.f32 %v1523, 1.442695
    %v1624 = vpow.pop %v1623
    %v1625 = vmul.f32 %v1226, %v1622
    %v1626 = vmul.f32 %v1227, %v1624
    %v1627 = vadd.f32 %v1625, %v1613
    %v1628 = vadd.f32 %v1626, %v1618
    %v1629 = vadd.f32 %v1228, %v1522
    %v1630 = vadd.f32 %v1229, %v1523
    %vm1631 = vcmask 64512
    %1632 = vst.msk [vmem:[%s7] sm:$0xff] %vm1631, %v1627
    %1633 = vst.msk [vmem:[%s7 + $0x8] sm:$0xff] %vm1631, %v1628
    %v1634 = vsel %vm1631, %v1629, 0.0
    %v1635 = vsel %vm1631, %v1630, 0.0
    %v1636 = vadd.f32 %v1634, %v1635
    %v1637 = vrot.slane %v1636, 4
    %v1638 = vadd.f32 %v1636, %v1637
    %v1639 = vrot.slane %v1638, 2
    %v1640 = vadd.f32 %v1638, %v1639
    %v1641 = vrot.slane %v1640, 1
    %v1642 = vadd.f32 %v1640, %v1641
    %vm1643 = vcmask 57344
    %1644 = vst.msk [vmem:[#allocation2] sm:$0x1] %vm1643, %v1642
    // Predicated region
    $region30: #{tpu_custom_call.1} parent=1 // pred_check
      _
    $region31: #{tpu_custom_call.1} parent=1 // pred_check_branch
      %1646 = sbr.rel (0) target = $region33
    $region32: #{tpu_custom_call.1} parent=1 // pred_region
      _
    $region33: #{tpu_custom_call.1} parent=1 // pred_fallthru
      _
    // Predicated region
    $region34: #{tpu_custom_call.1} parent=1 // pred_check
      _
    $region35: #{tpu_custom_call.1} parent=1 // pred_check_branch
      %1648 = sbr.rel (0) target = $region37
    $region36: #{tpu_custom_call.1} parent=1 // pred_region
      %s1650 = ssub.s32 16, 16
      %1651 = vsyncadd [#allocation3], %s1650
      %s1653 = sshll.u32 [#allocation2], 4
      %s1654 = int_to_ptr.vmem [resolvable:$true] %s1653
      %1656 = dma.vmem_to_hbm [thread:$0]  %s1654, 16, %s8, [#allocation3]
    $region37: #{tpu_custom_call.1} parent=1 // pred_fallthru
      _
    // Predicated region
    $region38: #{tpu_custom_call.1} parent=1 // pred_check
      _
    $region39: #{tpu_custom_call.1} parent=1 // pred_check_branch
      %1658 = sbr.rel (0) target = $region41
    $region40: #{tpu_custom_call.1} parent=1 // pred_region
      _
    $region41: #{tpu_custom_call.1} parent=1 // pred_fallthru
      _
    // Predicated region
    $region42: #{tpu_custom_call.1} parent=1 // pred_check
      _
    $region43: #{tpu_custom_call.1} parent=1 // pred_check_branch
      %1660 = sbr.rel (0) target = $region45
    $region44: #{tpu_custom_call.1} parent=1 // pred_region
      %1661 = dma.done [#allocation3], 16
    $region45: #{tpu_custom_call.1} parent=1 // pred_fallthru
      _
    %1662 = vsyncpa [#allocation3], 1

</llo_original>
